<compile_context>
chip_gen: v7x
topology: tpu7x:2x2x1
jax: 0.10.0
libtpu: 0.0.40
codegen_flags: <defaults>
</compile_context>

<pallas_src>
import functools
import math

import jax
import jax.numpy as jnp
from jax.experimental import pallas as pl
from jax.experimental.pallas import tpu as pltpu


# ----------------------------------------------------------------------------
# Pallas kernel: attention + fused conv + relu + max-pool + fc for one batch
# block (all examples of the block in a single invocation).
# ----------------------------------------------------------------------------
def _textcnn_kernel(x_ref, wqkv_ref, bqkv_ref, wconv_ref, bconv_ref,
                    wfc_ref, bfc_ref, out_ref, xpad_ref, *,
                    batch_block, seq_len, num_heads, kernel_sizes, pad):
    Bb, L, H = batch_block, seq_len, num_heads
    E = wqkv_ref.shape[0]
    D = E // H
    n_ks = len(kernel_sizes)
    NC = wconv_ref.shape[-1]                 # n_ks * Co
    Co = NC // n_ks
    f_max, f_min = max(kernel_sizes), min(kernel_sizes)
    T_pad = (L + 2 * pad - f_min + 1 + 7) // 8 * 8   # 8-aligned window count
    Lpad = xpad_ref.shape[1]                 # 8-aligned padded seq length
    mx = wqkv_ref.dtype                      # MXU operand dtype (bf16 or f32)

    # --- fused QKV projection (scale 1/sqrt(D) is pre-folded into Q columns) --
    x = x_ref[...]                                             # [Bb*L, E]
    qkv = jnp.dot(x, wqkv_ref[...],
                  preferred_element_type=jnp.float32) + bqkv_ref[...]
    qkv = qkv.reshape(Bb, L, 3 * E)

    # --- self-attention with heads folded into the batch dim ----------------
    def heads(base):
        return jnp.concatenate(
            [qkv[:, :, base + h * D: base + (h + 1) * D] for h in range(H)],
            axis=0).astype(mx)                                 # [H*Bb, L, D]

    q, k, v = heads(0), heads(E), heads(2 * E)
    s = jnp.einsum('bqd,bkd->bqk', q, k,
                   preferred_element_type=jnp.float32)         # [H*Bb, L, L]
    s = s - jnp.max(s, axis=-1, keepdims=True)
    p = jnp.exp(s)
    p = p * pl.reciprocal(jnp.sum(p, axis=-1, keepdims=True), approx=True)
    ctx_f = jnp.einsum('bqk,bkd->bqd', p.astype(mx), v,
                       preferred_element_type=jnp.float32)     # [H*Bb, L, D]
    ctx = jnp.concatenate([ctx_f[h * Bb:(h + 1) * Bb] for h in range(H)],
                          axis=-1)                             # [Bb, L, E]
    # TODO(synk): attn_dropout / dropout are identity here (inference mode).

    # --- padded-sequence scratch: zero halo rows, drop ctx into the interior --
    xpad_ref[:, :pad, :] = jnp.zeros((Bb, pad, E), jnp.float32)
    xpad_ref[:, pad + L:, :] = jnp.zeros((Bb, Lpad - pad - L, E), jnp.float32)
    xpad_ref[:, pad:pad + L, :] = ctx
    xp = xpad_ref[...]                                         # [Bb, Lpad, E]

    # --- all convs fused as a sum of f_max shifted [Bb*T_pad,E]x[E,NC] dots ---
    w_all = wconv_ref[...]                                     # [f_max*E, NC]
    acc = jnp.zeros((Bb * T_pad, NC), jnp.float32)
    for j in range(f_max):                                     # static tap loop
        xj = xp[:, j:j + T_pad, :].reshape(Bb * T_pad, E).astype(mx)
        acc = acc + jnp.dot(xj, w_all[j * E:(j + 1) * E, :],
                            preferred_element_type=jnp.float32)
    conv = jnp.maximum(acc.reshape(Bb, T_pad, NC) + bconv_ref[...], 0.0)

    # --- global max-pool per kernel-size group over its valid rows (static) ---
    feats = []
    for i, f in enumerate(kernel_sizes):
        out_len = L + 2 * pad - f + 1
        feats.append(jnp.max(conv[:, :out_len, i * Co:(i + 1) * Co], axis=1))
    feat = jnp.concatenate(feats, axis=-1)                     # [Bb, NC]

    # --- classifier (output lanes padded to 128; wrapper slices [:, :C]) -----
    logit = jnp.dot(feat.astype(mx), wfc_ref[...],
                    preferred_element_type=jnp.float32) + bfc_ref[...]
    out_ref[...] = logit.astype(out_ref.dtype)                 # [Bb, Cpad]


# ----------------------------------------------------------------------------
# Wrapper
# ----------------------------------------------------------------------------
def _default_num_blocks(batch):
    # v7x has 2 TensorCores/chip: give the "parallel" batch axis >= 2 grid
    # steps there.  Single-step grid on single-TC v5e/v6e (avoids extra
    # per-step overhead).
    try:
        kind = jax.devices()[0].device_kind.lower()
    except Exception:
        kind = ""
    if "v7" in kind and batch % 2 == 0:
        return 2
    return 1


def textcnn_forward(tokens, params, *, num_heads=2, kernel_sizes=(3, 4, 5),
                    pad=2, mxu_dtype=jnp.bfloat16, num_batch_blocks=None):
    emb = params["embedding"][tokens]             # glue: embedding gather, [B, L, E]
    B, L, E = emb.shape
    assert E % num_heads == 0
    D = E // num_heads
    Co = params["conv_w"][0].shape[-1]
    C = params["fc_w"].shape[-1]
    n_ks = len(kernel_sizes)
    NC = n_ks * Co
    f_max, f_min = max(kernel_sizes), min(kernel_sizes)
    T_pad = (L + 2 * pad - f_min + 1 + 7) // 8 * 8
    Lpad = (T_pad + f_max - 1 + 7) // 8 * 8
    Cpad = max(128, -(-C // 128) * 128)           # lane-dense fc output width

    if num_batch_blocks is None:
        num_batch_blocks = _default_num_blocks(B)
    nblk = num_batch_blocks if (num_batch_blocks > 0 and B % num_batch_blocks == 0) else 1
    Bb = B // nblk

    # ---- fuse / pre-scale parameters once on the wrapper side ---------------
    inv_sqrt_d = 1.0 / math.sqrt(D)
    wqkv = jnp.concatenate([params["wq"] * inv_sqrt_d, params["wk"], params["wv"]],
                           axis=1).astype(mxu_dtype)                 # [E, 3E]
    bqkv = jnp.concatenate([params["bq"] * inv_sqrt_d, params["bk"], params["bv"]],
                           axis=1).astype(jnp.float32)               # [1, 3E]

    wconv = jnp.zeros((f_max * E, NC), jnp.float32)
    for i, f in enumerate(kernel_sizes):
        wconv = wconv.at[:f * E, i * Co:(i + 1) * Co].set(
            params["conv_w"][i].reshape(f * E, Co))
    wconv = wconv.astype(mxu_dtype)                                  # [f_max*E, NC]
    bconv = jnp.concatenate(params["conv_b"], axis=1).astype(jnp.float32)  # [1, NC]

    wfc = jnp.zeros((NC, Cpad), jnp.float32).at[:, :C].set(
        params["fc_w"]).astype(mxu_dtype)                            # [NC, Cpad]
    bfc = jnp.zeros((1, Cpad), jnp.float32).at[:, :C].set(params["fc_b"])

    x3 = emb.reshape(nblk, Bb * L, E).astype(mxu_dtype)              # [nblk, Bb*L, E]

    kernel = functools.partial(
        _textcnn_kernel, batch_block=Bb, seq_len=L, num_heads=num_heads,
        kernel_sizes=tuple(kernel_sizes), pad=pad)

    def fixed(shape):
        n = len(shape)
        return pl.BlockSpec(shape, lambda b: (0,) * n)

    flops = int(2 * B * L * E * 3 * E                 # qkv projection
                + 4 * B * num_heads * L * L * D       # attention matmuls
                + 2 * f_max * B * T_pad * E * NC      # conv taps
                + 2 * B * NC * Cpad)                  # classifier
    transcend = int(B * num_heads * L * L)
    bytes_acc = int(x3.nbytes + wqkv.nbytes + bqkv.nbytes + wconv.nbytes
                    + bconv.nbytes + wfc.nbytes + bfc.nbytes
                    + nblk * Bb * Cpad * 4)

    # NOTE: at larger E/vocab, re-derive VMEM per generation (v7x: 64 MiB
    # physical) and pass pltpu.CompilerParams(vmem_limit_bytes=...); tiny here.
    out3 = pl.pallas_call(
        kernel,
        grid=(nblk,),
        in_specs=[
            pl.BlockSpec((None, Bb * L, E), lambda b: (b, 0, 0)),
            fixed((E, 3 * E)), fixed((1, 3 * E)),
            fixed((f_max * E, NC)), fixed((1, NC)),
            fixed((NC, Cpad)), fixed((1, Cpad)),
        ],
        out_specs=pl.BlockSpec((None, Bb, Cpad), lambda b: (b, 0, 0)),
        out_shape=jax.ShapeDtypeStruct((nblk, Bb, Cpad), jnp.float32),
        scratch_shapes=[pltpu.VMEM((Bb, Lpad, E), jnp.float32)],
        compiler_params=pltpu.CompilerParams(dimension_semantics=("parallel",)),
        cost_estimate=pl.CostEstimate(flops=flops, transcendentals=transcend,
                                      bytes_accessed=bytes_acc),
    )(x3, wqkv, bqkv, wconv, bconv, wfc, bfc)

    return out3.reshape(B, Cpad)[:, :C]                              # [B, C]


# ----------------------------------------------------------------------------
# Pure-JAX reference (for correctness check)
# ----------------------------------------------------------------------------
def textcnn_reference(tokens, params, *, num_heads=2, kernel_sizes=(3, 4, 5), pad=2):
    x = params["embedding"][tokens]               # [B, L, E]
    B, L, E = x.shape
    D = E // num_heads
    q = x @ params["wq"] + params["bq"][0]
    k = x @ params["wk"] + params["bk"][0]
    v = x @ params["wv"] + params["bv"][0]

    def split(t):
        return t.reshape(B, L, num_heads, D).transpose(0, 2, 1, 3)

    qh, kh, vh = split(q), split(k), split(v)
    s = (qh @ kh.transpose(0, 1, 3, 2)) / math.sqrt(D)
    p = jax.nn.softmax(s, axis=-1)
    ctx = (p @ vh).transpose(0, 2, 1, 3).reshape(B, L, E)

    xp = jnp.pad(ctx, ((0, 0), (pad, pad), (0, 0)))
    feats = []
    for i, f in enumerate(kernel_sizes):
        w = params["conv_w"][i]                   # [f, E, Co]
        b = params["conv_b"][i][0]
        out_len = L + 2 * pad - f + 1
        acc = jnp.zeros((B, out_len, w.shape[-1]), jnp.float32)
        for j in range(f):
            acc = acc + xp[:, j:j + out_len, :] @ w[j]
        acc = jnp.maximum(acc + b, 0.0)
        feats.append(jnp.max(acc, axis=1))        # [B, Co]
    feat = jnp.concatenate(feats, axis=-1)
    return feat @ params["fc_w"] + params["fc_b"][0]


# ----------------------------------------------------------------------------
# Deterministic synthetic parameters + run
# ----------------------------------------------------------------------------
def make_params(key, *, vocab, embed_dim, kernel_num, kernel_sizes, class_num):
    ks = jax.random.split(key, 12 + 2 * len(kernel_sizes))
    it = iter(ks)
    s = 0.1

    emb = s * jax.random.normal(next(it), (vocab, embed_dim), jnp.float32)
    emb = emb.at[0].set(0.0)                      # index 0 == 'None' row (zeros)

    params = {"embedding": emb}
    for name in ("q", "k", "v"):
        params[f"w{name}"] = s * jax.random.normal(next(it), (embed_dim, embed_dim), jnp.float32)
        params[f"b{name}"] = s * jax.random.normal(next(it), (1, embed_dim), jnp.float32)

    conv_w, conv_b = [], []
    for f in kernel_sizes:
        conv_w.append(s * jax.random.normal(next(it), (f, embed_dim, kernel_num), jnp.float32))
        conv_b.append(s * jax.random.normal(next(it), (1, kernel_num), jnp.float32))
    params["conv_w"], params["conv_b"] = conv_w, conv_b

    params["fc_w"] = s * jax.random.normal(
        next(it), (kernel_num * len(kernel_sizes), class_num), jnp.float32)
    params["fc_b"] = s * jax.random.normal(next(it), (1, class_num), jnp.float32)
    return params


if __name__ == "__main__":
    B, L = 2, 8
    vocab, embed_dim = 16, 32
    kernel_num, kernel_sizes, class_num = 8, (3, 4, 5), 4

    root = jax.random.PRNGKey(0)
    kp, kt = jax.random.split(root)
    params = make_params(kp, vocab=vocab, embed_dim=embed_dim,
                         kernel_num=kernel_num, kernel_sizes=kernel_sizes,
                         class_num=class_num)
    tokens = jax.random.randint(kt, (B, L), 0, vocab)

    out = textcnn_forward(tokens, params, num_heads=2,
                          kernel_sizes=kernel_sizes, pad=2)
    out = jax.block_until_ready(out)

    ref = textcnn_reference(tokens, params, num_heads=2,
                            kernel_sizes=kernel_sizes, pad=2)
    assert out.shape == (B, class_num)
    # bf16 MXU operands (f32 accumulation) -> loosened tolerance vs the f32 ref.
    assert jnp.allclose(out, ref, atol=2e-2, rtol=2e-2), (out, ref)
    print("KERNEL_OK")
</pallas_src>

<mosaic_0001>
module attributes {stable_mosaic.version = 11 : i64} {
  func.func @_textcnn_kernel(%arg0: i32, %arg1: memref<1x16x32xbf16, #tpu.memory_space<vmem>>, %arg2: memref<32x96xbf16, #tpu.memory_space<vmem>>, %arg3: memref<1x96xf32, #tpu.memory_space<vmem>>, %arg4: memref<160x24xbf16, #tpu.memory_space<vmem>>, %arg5: memref<1x24xf32, #tpu.memory_space<vmem>>, %arg6: memref<24x128xbf16, #tpu.memory_space<vmem>>, %arg7: memref<1x128xf32, #tpu.memory_space<vmem>>, %arg8: memref<1x2x128xf32, #tpu.memory_space<vmem>>, %arg9: memref<2x24x32xf32, #tpu.memory_space<vmem>>) attributes {dimension_semantics = [#tpu.dimension_semantics<parallel>], iteration_bounds = array<i64: 1>, scalar_prefetch = 0 : i64, scratch_operands = 1 : i64, tpu.core_type = #tpu.core_type<tc>, window_params = [{transform_indices = @transform_0, window_bounds = array<i64: 1, 16, 32>}, {pipeline_mode = #tpu.pipeline_mode<synchronous>, transform_indices = @transform_1, window_bounds = array<i64: 32, 96>}, {pipeline_mode = #tpu.pipeline_mode<synchronous>, transform_indices = @transform_2, window_bounds = array<i64: 1, 96>}, {pipeline_mode = #tpu.pipeline_mode<synchronous>, transform_indices = @transform_3, window_bounds = array<i64: 160, 24>}, {pipeline_mode = #tpu.pipeline_mode<synchronous>, transform_indices = @transform_4, window_bounds = array<i64: 1, 24>}, {pipeline_mode = #tpu.pipeline_mode<synchronous>, transform_indices = @transform_5, window_bounds = array<i64: 24, 128>}, {pipeline_mode = #tpu.pipeline_mode<synchronous>, transform_indices = @transform_6, window_bounds = array<i64: 1, 128>}, {transform_indices = @transform_7, window_bounds = array<i64: 1, 2, 128>}]} {
    %c0 = arith.constant 0 : index
    %c0_0 = arith.constant 0 : index
    %c0_1 = arith.constant 0 : index
    %0 = vector.load %arg1[%c0, %c0_0, %c0_1] : memref<1x16x32xbf16, #tpu.memory_space<vmem>>, vector<1x16x32xbf16>
    %1 = vector.shape_cast %0 : vector<1x16x32xbf16> to vector<16x32xbf16>
    %c0_2 = arith.constant 0 : index
    %c0_3 = arith.constant 0 : index
    %2 = vector.load %arg2[%c0_2, %c0_3] : memref<32x96xbf16, #tpu.memory_space<vmem>>, vector<32x96xbf16>
    %cst = arith.constant dense<0.000000e+00> : vector<16x96xf32>
    %3 = tpu.matmul %1, %2, %cst {dimension_numbers = #tpu.dot_dimension_numbers<[1], [0], [0], [1], [0, 0, 1, 1], [], []>} : vector<16x32xbf16>, vector<32x96xbf16>, vector<16x96xf32> -> vector<16x96xf32>
    %c0_4 = arith.constant 0 : index
    %c0_5 = arith.constant 0 : index
    %4 = vector.load %arg3[%c0_4, %c0_5] : memref<1x96xf32, #tpu.memory_space<vmem>>, vector<1x96xf32>
    %5 = vector.broadcast %4 : vector<1x96xf32> to vector<16x96xf32>
    %6 = arith.addf %3, %5 : vector<16x96xf32>
    %7 = vector.shape_cast %6 : vector<16x96xf32> to vector<2x8x96xf32>
    %8 = vector.extract_strided_slice %7 {offsets = [0, 0, 0], sizes = [2, 8, 16], strides = [1, 1, 1]} : vector<2x8x96xf32> to vector<2x8x16xf32>
    %9 = vector.extract_strided_slice %7 {offsets = [0, 0, 16], sizes = [2, 8, 16], strides = [1, 1, 1]} : vector<2x8x96xf32> to vector<2x8x16xf32>
    %10 = tpu.concatenate %8, %9 in 0 : vector<2x8x16xf32>, vector<2x8x16xf32> -> vector<4x8x16xf32>
    %11 = arith.truncf %10 : vector<4x8x16xf32> to vector<4x8x16xbf16>
    %12 = vector.extract_strided_slice %7 {offsets = [0, 0, 32], sizes = [2, 8, 16], strides = [1, 1, 1]} : vector<2x8x96xf32> to vector<2x8x16xf32>
    %13 = vector.extract_strided_slice %7 {offsets = [0, 0, 48], sizes = [2, 8, 16], strides = [1, 1, 1]} : vector<2x8x96xf32> to vector<2x8x16xf32>
    %14 = tpu.concatenate %12, %13 in 0 : vector<2x8x16xf32>, vector<2x8x16xf32> -> vector<4x8x16xf32>
    %15 = arith.truncf %14 : vector<4x8x16xf32> to vector<4x8x16xbf16>
    %16 = vector.extract_strided_slice %7 {offsets = [0, 0, 64], sizes = [2, 8, 16], strides = [1, 1, 1]} : vector<2x8x96xf32> to vector<2x8x16xf32>
    %17 = vector.extract_strided_slice %7 {offsets = [0, 0, 80], sizes = [2, 8, 16], strides = [1, 1, 1]} : vector<2x8x96xf32> to vector<2x8x16xf32>
    %18 = tpu.concatenate %16, %17 in 0 : vector<2x8x16xf32>, vector<2x8x16xf32> -> vector<4x8x16xf32>
    %19 = arith.truncf %18 : vector<4x8x16xf32> to vector<4x8x16xbf16>
    "tpu.trace_start"() <{level = 10 : i32, message = "bqd,bkd->bqk"}> : () -> ()
    %cst_6 = arith.constant dense<0.000000e+00> : vector<4x8x8xf32>
    %20 = tpu.matmul %11, %15, %cst_6 {dimension_numbers = #tpu.dot_dimension_numbers<[2], [2], [1], [1], [0, 0, 0, 1, 1, 1], [0], [0]>} : vector<4x8x16xbf16>, vector<4x8x16xbf16>, vector<4x8x8xf32> -> vector<4x8x8xf32>
    "tpu.trace_stop"() : () -> ()
    %cst_7 = arith.constant dense<0xFF800000> : vector<4x8xf32>
    %21 = vector.multi_reduction <maximumf>, %20, %cst_7 [2] : vector<4x8x8xf32> to vector<4x8xf32>
    %22 = vector.shape_cast %21 : vector<4x8xf32> to vector<4x8x1xf32>
    %23 = vector.broadcast %22 : vector<4x8x1xf32> to vector<4x8x8xf32>
    %24 = arith.subf %20, %23 : vector<4x8x8xf32>
    %25 = math.exp %24 : vector<4x8x8xf32>
    %cst_8 = arith.constant dense<0.000000e+00> : vector<4x8xf32>
    %26 = vector.multi_reduction <add>, %25, %cst_8 [2] : vector<4x8x8xf32> to vector<4x8xf32>
    %27 = vector.shape_cast %26 : vector<4x8xf32> to vector<4x8x1xf32>
    %28 = tpu.reciprocal %27 {approx = true} : vector<4x8x1xf32> -> vector<4x8x1xf32>
    %29 = vector.broadcast %28 : vector<4x8x1xf32> to vector<4x8x8xf32>
    %30 = arith.mulf %25, %29 : vector<4x8x8xf32>
    %31 = arith.truncf %30 : vector<4x8x8xf32> to vector<4x8x8xbf16>
    "tpu.trace_start"() <{level = 10 : i32, message = "bqk,bkd->bqd"}> : () -> ()
    %cst_9 = arith.constant dense<0.000000e+00> : vector<4x8x16xf32>
    %32 = tpu.matmul %31, %19, %cst_9 {dimension_numbers = #tpu.dot_dimension_numbers<[2], [1], [1], [2], [0, 0, 0, 1, 1, 2], [0], [0]>} : vector<4x8x8xbf16>, vector<4x8x16xbf16>, vector<4x8x16xf32> -> vector<4x8x16xf32>
    "tpu.trace_stop"() : () -> ()
    %33 = vector.extract_strided_slice %32 {offsets = [0, 0, 0], sizes = [2, 8, 16], strides = [1, 1, 1]} : vector<4x8x16xf32> to vector<2x8x16xf32>
    %34 = vector.extract_strided_slice %32 {offsets = [2, 0, 0], sizes = [2, 8, 16], strides = [1, 1, 1]} : vector<4x8x16xf32> to vector<2x8x16xf32>
    %35 = tpu.concatenate %33, %34 in 2 : vector<2x8x16xf32>, vector<2x8x16xf32> -> vector<2x8x32xf32>
    %cst_10 = arith.constant 0.000000e+00 : f32
    %36 = vector.broadcast %cst_10 : f32 to vector<2x2x32xf32>
    %c0_11 = arith.constant 0 : index
    %c0_12 = arith.constant 0 : index
    %c0_13 = arith.constant 0 : index
    %37 = vector.load %arg9[%c0_11, %c0_12, %c0_13] : memref<2x24x32xf32, #tpu.memory_space<vmem>>, vector<2x2x32xf32>
    tpu.vector_store %arg9[%c0_11, %c0_12, %c0_13], %36 {strides = array<i32>} : memref<2x24x32xf32, #tpu.memory_space<vmem>>, vector<2x2x32xf32>,
    %cst_14 = arith.constant 0.000000e+00 : f32
    %38 = vector.broadcast %cst_14 : f32 to vector<2x14x32xf32>
    %c0_15 = arith.constant 0 : index
    %c10 = arith.constant 10 : index
    %c0_16 = arith.constant 0 : index
    %39 = vector.load %arg9[%c0_15, %c10, %c0_16] : memref<2x24x32xf32, #tpu.memory_space<vmem>>, vector<2x14x32xf32>
    tpu.vector_store %arg9[%c0_15, %c10, %c0_16], %38 {strides = array<i32>} : memref<2x24x32xf32, #tpu.memory_space<vmem>>, vector<2x14x32xf32>,
    %c0_17 = arith.constant 0 : index
    %c2 = arith.constant 2 : index
    %c0_18 = arith.constant 0 : index
    %40 = vector.load %arg9[%c0_17, %c2, %c0_18] : memref<2x24x32xf32, #tpu.memory_space<vmem>>, vector<2x8x32xf32>
    tpu.vector_store %arg9[%c0_17, %c2, %c0_18], %35 {strides = array<i32>} : memref<2x24x32xf32, #tpu.memory_space<vmem>>, vector<2x8x32xf32>,
    %c0_19 = arith.constant 0 : index
    %c0_20 = arith.constant 0 : index
    %c0_21 = arith.constant 0 : index
    %41 = vector.load %arg9[%c0_19, %c0_20, %c0_21] : memref<2x24x32xf32, #tpu.memory_space<vmem>>, vector<2x24x32xf32>
    %c0_22 = arith.constant 0 : index
    %c0_23 = arith.constant 0 : index
    %42 = vector.load %arg4[%c0_22, %c0_23] : memref<160x24xbf16, #tpu.memory_space<vmem>>, vector<160x24xbf16>
    %cst_24 = arith.constant 0.000000e+00 : f32
    %43 = vector.broadcast %cst_24 : f32 to vector<32x24xf32>
    %44 = vector.extract_strided_slice %41 {offsets = [0, 0, 0], sizes = [2, 16, 32], strides = [1, 1, 1]} : vector<2x24x32xf32> to vector<2x16x32xf32>
    %45 = vector.shape_cast %44 : vector<2x16x32xf32> to vector<32x32xf32>
    %46 = arith.truncf %45 : vector<32x32xf32> to vector<32x32xbf16>
    %47 = vector.extract_strided_slice %42 {offsets = [0, 0], sizes = [32, 24], strides = [1, 1]} : vector<160x24xbf16> to vector<32x24xbf16>
    %cst_25 = arith.constant dense<0.000000e+00> : vector<32x24xf32>
    %48 = tpu.matmul %46, %47, %cst_25 {dimension_numbers = #tpu.dot_dimension_numbers<[1], [0], [0], [1], [0, 0, 1, 1], [], []>} : vector<32x32xbf16>, vector<32x24xbf16>, vector<32x24xf32> -> vector<32x24xf32>
    %49 = arith.addf %43, %48 : vector<32x24xf32>
    %50 = vector.extract_strided_slice %41 {offsets = [0, 1, 0], sizes = [2, 16, 32], strides = [1, 1, 1]} : vector<2x24x32xf32> to vector<2x16x32xf32>
    %51 = vector.shape_cast %50 : vector<2x16x32xf32> to vector<32x32xf32>
    %52 = arith.truncf %51 : vector<32x32xf32> to vector<32x32xbf16>
    %53 = vector.extract_strided_slice %42 {offsets = [32, 0], sizes = [32, 24], strides = [1, 1]} : vector<160x24xbf16> to vector<32x24xbf16>
    %cst_26 = arith.constant dense<0.000000e+00> : vector<32x24xf32>
    %54 = tpu.matmul %52, %53, %cst_26 {dimension_numbers = #tpu.dot_dimension_numbers<[1], [0], [0], [1], [0, 0, 1, 1], [], []>} : vector<32x32xbf16>, vector<32x24xbf16>, vector<32x24xf32> -> vector<32x24xf32>
    %55 = arith.addf %49, %54 : vector<32x24xf32>
    %56 = vector.extract_strided_slice %41 {offsets = [0, 2, 0], sizes = [2, 16, 32], strides = [1, 1, 1]} : vector<2x24x32xf32> to vector<2x16x32xf32>
    %57 = vector.shape_cast %56 : vector<2x16x32xf32> to vector<32x32xf32>
    %58 = arith.truncf %57 : vector<32x32xf32> to vector<32x32xbf16>
    %59 = vector.extract_strided_slice %42 {offsets = [64, 0], sizes = [32, 24], strides = [1, 1]} : vector<160x24xbf16> to vector<32x24xbf16>
    %cst_27 = arith.constant dense<0.000000e+00> : vector<32x24xf32>
    %60 = tpu.matmul %58, %59, %cst_27 {dimension_numbers = #tpu.dot_dimension_numbers<[1], [0], [0], [1], [0, 0, 1, 1], [], []>} : vector<32x32xbf16>, vector<32x24xbf16>, vector<32x24xf32> -> vector<32x24xf32>
    %61 = arith.addf %55, %60 : vector<32x24xf32>
    %62 = vector.extract_strided_slice %41 {offsets = [0, 3, 0], sizes = [2, 16, 32], strides = [1, 1, 1]} : vector<2x24x32xf32> to vector<2x16x32xf32>
    %63 = vector.shape_cast %62 : vector<2x16x32xf32> to vector<32x32xf32>
    %64 = arith.truncf %63 : vector<32x32xf32> to vector<32x32xbf16>
    %65 = vector.extract_strided_slice %42 {offsets = [96, 0], sizes = [32, 24], strides = [1, 1]} : vector<160x24xbf16> to vector<32x24xbf16>
    %cst_28 = arith.constant dense<0.000000e+00> : vector<32x24xf32>
    %66 = tpu.matmul %64, %65, %cst_28 {dimension_numbers = #tpu.dot_dimension_numbers<[1], [0], [0], [1], [0, 0, 1, 1], [], []>} : vector<32x32xbf16>, vector<32x24xbf16>, vector<32x24xf32> -> vector<32x24xf32>
    %67 = arith.addf %61, %66 : vector<32x24xf32>
    %68 = vector.extract_strided_slice %41 {offsets = [0, 4, 0], sizes = [2, 16, 32], strides = [1, 1, 1]} : vector<2x24x32xf32> to vector<2x16x32xf32>
    %69 = vector.shape_cast %68 : vector<2x16x32xf32> to vector<32x32xf32>
    %70 = arith.truncf %69 : vector<32x32xf32> to vector<32x32xbf16>
    %71 = vector.extract_strided_slice %42 {offsets = [128, 0], sizes = [32, 24], strides = [1, 1]} : vector<160x24xbf16> to vector<32x24xbf16>
    %cst_29 = arith.constant dense<0.000000e+00> : vector<32x24xf32>
    %72 = tpu.matmul %70, %71, %cst_29 {dimension_numbers = #tpu.dot_dimension_numbers<[1], [0], [0], [1], [0, 0, 1, 1], [], []>} : vector<32x32xbf16>, vector<32x24xbf16>, vector<32x24xf32> -> vector<32x24xf32>
    %73 = arith.addf %67, %72 : vector<32x24xf32>
    %74 = vector.shape_cast %73 : vector<32x24xf32> to vector<2x16x24xf32>
    %c0_30 = arith.constant 0 : index
    %c0_31 = arith.constant 0 : index
    %75 = vector.load %arg5[%c0_30, %c0_31] : memref<1x24xf32, #tpu.memory_space<vmem>>, vector<1x24xf32>
    %76 = vector.shape_cast %75 : vector<1x24xf32> to vector<1x1x24xf32>
    %77 = vector.broadcast %76 : vector<1x1x24xf32> to vector<2x16x24xf32>
    %78 = arith.addf %74, %77 : vector<2x16x24xf32>
    %cst_32 = arith.constant 0.000000e+00 : f32
    %79 = vector.broadcast %cst_32 : f32 to vector<2x16x24xf32>
    %80 = arith.maximumf %78, %79 : vector<2x16x24xf32>
    %81 = vector.extract_strided_slice %80 {offsets = [0, 0, 0], sizes = [2, 10, 8], strides = [1, 1, 1]} : vector<2x16x24xf32> to vector<2x10x8xf32>
    %cst_33 = arith.constant dense<0xFF800000> : vector<2x8xf32>
    %82 = vector.multi_reduction <maximumf>, %81, %cst_33 [1] : vector<2x10x8xf32> to vector<2x8xf32>
    %83 = vector.extract_strided_slice %80 {offsets = [0, 0, 8], sizes = [2, 9, 8], strides = [1, 1, 1]} : vector<2x16x24xf32> to vector<2x9x8xf32>
    %cst_34 = arith.constant dense<0xFF800000> : vector<2x8xf32>
    %84 = vector.multi_reduction <maximumf>, %83, %cst_34 [1] : vector<2x9x8xf32> to vector<2x8xf32>
    %85 = vector.extract_strided_slice %80 {offsets = [0, 0, 16], sizes = [2, 8, 8], strides = [1, 1, 1]} : vector<2x16x24xf32> to vector<2x8x8xf32>
    %cst_35 = arith.constant dense<0xFF800000> : vector<2x8xf32>
    %86 = vector.multi_reduction <maximumf>, %85, %cst_35 [1] : vector<2x8x8xf32> to vector<2x8xf32>
    %87 = tpu.concatenate %82, %84, %86 in 1 : vector<2x8xf32>, vector<2x8xf32>, vector<2x8xf32> -> vector<2x24xf32>
    %88 = arith.truncf %87 : vector<2x24xf32> to vector<2x24xbf16>
    %c0_36 = arith.constant 0 : index
    %c0_37 = arith.constant 0 : index
    %89 = vector.load %arg6[%c0_36, %c0_37] : memref<24x128xbf16, #tpu.memory_space<vmem>>, vector<24x128xbf16>
    %cst_38 = arith.constant dense<0.000000e+00> : vector<2x128xf32>
    %90 = tpu.matmul %88, %89, %cst_38 {dimension_numbers = #tpu.dot_dimension_numbers<[1], [0], [0], [1], [0, 0, 1, 1], [], []>} : vector<2x24xbf16>, vector<24x128xbf16>, vector<2x128xf32> -> vector<2x128xf32>
    %c0_39 = arith.constant 0 : index
    %c0_40 = arith.constant 0 : index
    %91 = vector.load %arg7[%c0_39, %c0_40] : memref<1x128xf32, #tpu.memory_space<vmem>>, vector<1x128xf32>
    %92 = vector.broadcast %91 : vector<1x128xf32> to vector<2x128xf32>
    %93 = arith.addf %90, %92 : vector<2x128xf32>
    %c0_41 = arith.constant 0 : index
    %c0_42 = arith.constant 0 : index
    %c0_43 = arith.constant 0 : index
    %94 = vector.load %arg8[%c0_41, %c0_42, %c0_43] : memref<1x2x128xf32, #tpu.memory_space<vmem>>, vector<1x2x128xf32>
    %95 = vector.shape_cast %94 : vector<1x2x128xf32> to vector<2x128xf32>
    %96 = vector.shape_cast %93 : vector<2x128xf32> to vector<1x2x128xf32>
    tpu.vector_store %arg8[%c0_41, %c0_42, %c0_43], %96 {strides = array<i32>} : memref<1x2x128xf32, #tpu.memory_space<vmem>>, vector<1x2x128xf32>,
    return
  }
  func.func @transform_0(%arg0: i32) -> (i32, i32, i32) {
    %c0_i32 = arith.constant 0 : i32
    %c0_i32_0 = arith.constant 0 : i32
    %c0_i32_1 = arith.constant 0 : i32
    return %arg0, %c0_i32, %c0_i32_0 : i32, i32, i32
  }
  func.func @transform_1(%arg0: i32) -> (i32, i32) {
    %c0_i32 = arith.constant 0 : i32
    %c0_i32_0 = arith.constant 0 : i32
    %c0_i32_1 = arith.constant 0 : i32
    return %c0_i32, %c0_i32_0 : i32, i32
  }
  func.func @transform_2(%arg0: i32) -> (i32, i32) {
    %c0_i32 = arith.constant 0 : i32
    %c0_i32_0 = arith.constant 0 : i32
    %c0_i32_1 = arith.constant 0 : i32
    return %c0_i32, %c0_i32_0 : i32, i32
  }
  func.func @transform_3(%arg0: i32) -> (i32, i32) {
    %c0_i32 = arith.constant 0 : i32
    %c0_i32_0 = arith.constant 0 : i32
    %c0_i32_1 = arith.constant 0 : i32
    return %c0_i32, %c0_i32_0 : i32, i32
  }
  func.func @transform_4(%arg0: i32) -> (i32, i32) {
    %c0_i32 = arith.constant 0 : i32
    %c0_i32_0 = arith.constant 0 : i32
    %c0_i32_1 = arith.constant 0 : i32
    return %c0_i32, %c0_i32_0 : i32, i32
  }
  func.func @transform_5(%arg0: i32) -> (i32, i32) {
    %c0_i32 = arith.constant 0 : i32
    %c0_i32_0 = arith.constant 0 : i32
    %c0_i32_1 = arith.constant 0 : i32
    return %c0_i32, %c0_i32_0 : i32, i32
  }
  func.func @transform_6(%arg0: i32) -> (i32, i32) {
    %c0_i32 = arith.constant 0 : i32
    %c0_i32_0 = arith.constant 0 : i32
    %c0_i32_1 = arith.constant 0 : i32
    return %c0_i32, %c0_i32_0 : i32, i32
  }
  func.func @transform_7(%arg0: i32) -> (i32, i32, i32) {
    %c0_i32 = arith.constant 0 : i32
    %c0_i32_0 = arith.constant 0 : i32
    %c0_i32_1 = arith.constant 0 : i32
    return %arg0, %c0_i32, %c0_i32_0 : i32, i32, i32
  }
}

</mosaic_0001>

<llo_original>
// kernel: tpu_custom_call.1
$region0: #{tpu_custom_call.1}
  #allocation0 [shape = 'u32[]', space=smem, size = 0x4, offset = 0x4, fixed_abs, tag = 'smem constant byte address 0x4 - core index']
  #allocation1 [shape = 'u32[144,128]{1,0:T(1,128)}', space=vmem, size = 0x12000, scoped, tag = 'internal scratch']
  #allocation2 [shape = 'f32[2,24,32]{2,1,0:T(8,128)}', space=vmem, size = 0x6000, scoped, tag = 'scratch operand']
  %s0 = inlined_call_operand.vmem [shape: bf16[1,16,32], index: 0, kind: input, shape index: {}]
  %s1 = inlined_call_operand.vmem [shape: bf16[32,96], index: 1, kind: input, shape index: {}]
  %s2 = inlined_call_operand.vmem [shape: f32[1,96], index: 2, kind: input, shape index: {}]
  %s3 = inlined_call_operand.vmem [shape: bf16[160,24], index: 3, kind: input, shape index: {}]
  %s4 = inlined_call_operand.vmem [shape: f32[1,24], index: 4, kind: input, shape index: {}]
  %s5 = inlined_call_operand.vmem [shape: bf16[24,128], index: 5, kind: input, shape index: {}]
  %s6 = inlined_call_operand.vmem [shape: f32[1,128], index: 6, kind: input, shape index: {}]
  %s7 = inlined_call_operand.hbm [shape: f32[1,2,128], index: 7, kind: output, shape index: {}]
  %s8 = sld [smem:[#allocation0]]
  $region38: #{tpu_custom_call.1} parent=0
    _
  %s10 = ssub.s32 1, %s8
  %s11 = scalar_select 0, %s10, %s8
  $region1: #{tpu_custom_call.1} parent=0
    #allocation3 [shape = 'u8[1024]{0}', space=vmem, size = 0x400, scoped, tag = 'output window, operand 0, single buffered']
    #allocation4 [shape = 's32[1]{0}', space=sflag, size = 0x4, scoped, tag = 'scoped memory for tpu_custom_call.1']
    %12 = vsyncpa [#allocation4], 0
    // Predicated region
    $region2: #{tpu_custom_call.1} parent=1 // pred_check
      _
    $region3: #{tpu_custom_call.1} parent=1 // pred_check_branch
      %14 = sbr.rel (0) target = $region5
    $region4: #{tpu_custom_call.1} parent=1 // pred_region
      _
    $region5: #{tpu_custom_call.1} parent=1 // pred_fallthru
      _
    // Predicated region
    $region6: #{tpu_custom_call.1} parent=1 // pred_check
      _
    $region7: #{tpu_custom_call.1} parent=1 // pred_check_branch
      %16 = sbr.rel (0) target = $region9
    $region8: #{tpu_custom_call.1} parent=1 // pred_region
      _
    $region9: #{tpu_custom_call.1} parent=1 // pred_fallthru
      _
    // Predicated region
    $region10: #{tpu_custom_call.1} parent=1 // pred_check
      _
    $region11: #{tpu_custom_call.1} parent=1 // pred_check_branch
      %18 = sbr.rel (0) target = $region13
    $region12: #{tpu_custom_call.1} parent=1 // pred_region
      _
    $region13: #{tpu_custom_call.1} parent=1 // pred_fallthru
      _
    // Predicated region
    $region14: #{tpu_custom_call.1} parent=1 // pred_check
      _
    $region15: #{tpu_custom_call.1} parent=1 // pred_check_branch
      %20 = sbr.rel (0) target = $region17
    $region16: #{tpu_custom_call.1} parent=1 // pred_region
      _
    $region17: #{tpu_custom_call.1} parent=1 // pred_fallthru
      _
    // Predicated region
    $region18: #{tpu_custom_call.1} parent=1 // pred_check
      _
    $region19: #{tpu_custom_call.1} parent=1 // pred_check_branch
      %22 = sbr.rel (0) target = $region21
    $region20: #{tpu_custom_call.1} parent=1 // pred_region
      _
    $region21: #{tpu_custom_call.1} parent=1 // pred_fallthru
      _
    // Predicated region
    $region22: #{tpu_custom_call.1} parent=1 // pred_check
      _
    $region23: #{tpu_custom_call.1} parent=1 // pred_check_branch
      %24 = sbr.rel (0) target = $region25
    $region24: #{tpu_custom_call.1} parent=1 // pred_region
      _
    $region25: #{tpu_custom_call.1} parent=1 // pred_fallthru
      _
    // Predicated region
    $region26: #{tpu_custom_call.1} parent=1 // pred_check
      _
    $region27: #{tpu_custom_call.1} parent=1 // pred_check_branch
      %26 = sbr.rel (0) target = $region29
    $region28: #{tpu_custom_call.1} parent=1 // pred_region
      _
    $region29: #{tpu_custom_call.1} parent=1 // pred_fallthru
      _
    %v28 = vld [vmem:[%s0] sm:$0xf]
    %v29 = vld [vmem:[%s0 + $0x4] sm:$0xf]
    %v30 = vld [vmem:[%s1] sm:$0xf]
    %v31 = vld [vmem:[%s1 + $0x4] sm:$0xf]
    %v32 = vld [vmem:[%s1 + $0x8] sm:$0xf]
    %v33 = vld [vmem:[%s1 + $0xc] sm:$0xf]
    %v34 = vld [vmem:[%s2] sm:$0x1]
    %v36 = vlaneseq
    %v37 = vshrl.u32 %v36, 7
    %v38 = vsub.s32 0, %v37
    %v39 = vrot.slane %v34, %v38
    %v43 = vunpack.c.l.b16 %v28
    %v44 = vunpack.c.l.b16 %v29
    %v45 = vpack.c.b16 %v44, %v43
    %v50 = vunpack.c.l.b16 %v30
    %v51 = vunpack.c.l.b16 %v31
    %v52 = vunpack.c.l.b16 %v32
    %v53 = vunpack.c.l.b16 %v33
    %v54 = vpack.c.b16 %v51, %v50
    %v55 = vpack.c.b16 %v53, %v52
    %vm58 = vcmask 261120
    %v60 = vsel %vm58, %v45, 0
    %62 = vmatprep.subr.bf16.mxu0 0
    %63 = vmatpush1.bf16.msra.mxu0 %v54
    %64 = vmatprep.subr.bf16.mxu0 0
    %65 = vmatpush1.bf16.msra.mxu0 %v55
    %66 = vmatprep.subr.bf16.mxu0 0
    %67 = vmatpush1.bf16.msra.mxu0 0
    %68 = vmatprep.subr.bf16.mxu0 0
    %69 = vmatpush1.bf16.msra.mxu0 0
    %70 = vmatprep.subr.bf16.mxu0 0
    %71 = vmatpush1.bf16.msra.mxu0 0
    %72 = vmatprep.subr.bf16.mxu0 0
    %73 = vmatpush1.bf16.msra.mxu0 0
    %74 = vmatprep.subr.bf16.mxu0 0
    %75 = vmatpush1.bf16.msra.mxu0 0
    %76 = vmatprep.subr.bf16.mxu0 0
    %77 = vmatpush1.bf16.msra.mxu0 0
    %78 = vmatprep.subr.bf16.mxu0 0
    %79 = vmatpush1.bf16.msra.mxu0 0
    %80 = vmatprep.subr.bf16.mxu0 0
    %81 = vmatpush1.bf16.msra.mxu0 0
    %82 = vmatprep.subr.bf16.mxu0 0
    %83 = vmatpush1.bf16.msra.mxu0 0
    %84 = vmatprep.subr.bf16.mxu0 0
    %85 = vmatpush1.bf16.msra.mxu0 0
    %86 = vmatprep.subr.bf16.mxu0 0
    %87 = vmatpush1.bf16.msra.mxu0 0
    %88 = vmatprep.subr.bf16.mxu0 0
    %89 = vmatpush1.bf16.msra.mxu0 0
    %90 = vmatprep.subr.bf16.mxu0 0
    %91 = vmatpush1.bf16.msra.mxu0 0
    %92 = vmatprep.subr.bf16.mxu0 0
    %93 = vmatpush1.bf16.msra.mxu0 0
    %94 = vmatprep.mubr.bf16.mxu0 0
    %95 = vmatmul.mubr.bf16.gmra.mrb[0].mxu0 %v60
    %v96 = vpop.f32.mrb[0].mxu0
    %v97 = vadd.f32 %v39, %v96
    %v98 = vpop.f32.mrb[0].mxu0
    %v99 = vpop.f32.mrb[0].mxu0
    %v100 = vadd.f32 %v39, %v99
    %v101 = vpop.f32.mrb[0].mxu0
    %102 = vdwg.mxu0
    %105 = vrot.lane.b32.xlu0 %v97, 112
    %v106 = vpop.permute.xlu0 %105
    %107 = vrot.lane.b32.xlu0 %v100, 112
    %v108 = vpop.permute.xlu0 %107
    %v111 = vpack.c.bf16 %v97, %v97
    %v112 = vpack.c.bf16 %v100, %v100
    %v113 = vpack.c.bf16 %v106, %v106
    %v114 = vpack.c.bf16 %v108, %v108
    %116 = vrot.lane.b32.xlu0 %v111, 96
    %v117 = vpop.permute.xlu0 %116
    %vm118 = vcmask 130048
    %v120 = vsel %vm118, %v111, 0
    %v123 = vsel %vm118, %v117, 0
    %125 = vmatprep.subr.bf16.mxu0 0
    %126 = vmatpush1.bf16.xpose.msra.mxu0 %v123
    %127 = vmatprep.subr.bf16.mxu0 0
    %128 = vmatpush1.bf16.xpose.msra.mxu0 0
    %129 = vmatprep.subr.bf16.mxu0 0
    %130 = vmatpush1.bf16.xpose.msra.mxu0 0
    %131 = vmatprep.subr.bf16.mxu0 0
    %132 = vmatpush1.bf16.xpose.msra.mxu0 0
    %133 = vmatprep.subr.bf16.mxu0 0
    %134 = vmatpush1.bf16.xpose.msra.mxu0 0
    %135 = vmatprep.subr.bf16.mxu0 0
    %136 = vmatpush1.bf16.xpose.msra.mxu0 0
    %137 = vmatprep.subr.bf16.mxu0 0
    %138 = vmatpush1.bf16.xpose.msra.mxu0 0
    %139 = vmatprep.subr.bf16.mxu0 0
    %140 = vmatpush1.bf16.xpose.msra.mxu0 0
    %141 = vmatprep.subr.bf16.mxu0 0
    %142 = vmatpush1.bf16.xpose.msra.mxu0 0
    %143 = vmatprep.subr.bf16.mxu0 0
    %144 = vmatpush1.bf16.xpose.msra.mxu0 0
    %145 = vmatprep.subr.bf16.mxu0 0
    %146 = vmatpush1.bf16.xpose.msra.mxu0 0
    %147 = vmatprep.subr.bf16.mxu0 0
    %148 = vmatpush1.bf16.xpose.msra.mxu0 0
    %149 = vmatprep.subr.bf16.mxu0 0
    %150 = vmatpush1.bf16.xpose.msra.mxu0 0
    %151 = vmatprep.subr.bf16.mxu0 0
    %152 = vmatpush1.bf16.xpose.msra.mxu0 0
    %153 = vmatprep.subr.bf16.mxu0 0
    %154 = vmatpush1.bf16.xpose.msra.mxu0 0
    %155 = vmatprep.subr.bf16.mxu0 0
    %156 = vmatpush1.bf16.xpose.msra.mxu0 0
    %157 = vmatprep.mubr.bf16.mxu0 0
    %158 = vmatmul.mubr.bf16.gmra.mrb[0].mxu0 %v120
    %v159 = vpop.f32.mrb[0].mxu0
    %v160 = vadd.f32 0.0, %v159
    %v161 = vpop.f32.mrb[0].mxu0
    %v162 = vpop.f32.mrb[0].mxu0
    %v163 = vpop.f32.mrb[0].mxu0
    %164 = vdwg.mxu0
    %166 = vrot.lane.b32.xlu0 %v112, 96
    %v167 = vpop.permute.xlu0 %166
    %v169 = vsel %vm118, %v112, 0
    %v172 = vsel %vm118, %v167, 0
    %174 = vmatprep.subr.bf16.mxu0 0
    %175 = vmatpush1.bf16.xpose.msra.mxu0 %v172
    %176 = vmatprep.subr.bf16.mxu0 0
    %177 = vmatpush1.bf16.xpose.msra.mxu0 0
    %178 = vmatprep.subr.bf16.mxu0 0
    %179 = vmatpush1.bf16.xpose.msra.mxu0 0
    %180 = vmatprep.subr.bf16.mxu0 0
    %181 = vmatpush1.bf16.xpose.msra.mxu0 0
    %182 = vmatprep.subr.bf16.mxu0 0
    %183 = vmatpush1.bf16.xpose.msra.mxu0 0
    %184 = vmatprep.subr.bf16.mxu0 0
    %185 = vmatpush1.bf16.xpose.msra.mxu0 0
    %186 = vmatprep.subr.bf16.mxu0 0
    %187 = vmatpush1.bf16.xpose.msra.mxu0 0
    %188 = vmatprep.subr.bf16.mxu0 0
    %189 = vmatpush1.bf16.xpose.msra.mxu0 0
    %190 = vmatprep.subr.bf16.mxu0 0
    %191 = vmatpush1.bf16.xpose.msra.mxu0 0
    %192 = vmatprep.subr.bf16.mxu0 0
    %193 = vmatpush1.bf16.xpose.msra.mxu0 0
    %194 = vmatprep.subr.bf16.mxu0 0
    %195 = vmatpush1.bf16.xpose.msra.mxu0 0
    %196 = vmatprep.subr.bf16.mxu0 0
    %197 = vmatpush1.bf16.xpose.msra.mxu0 0
    %198 = vmatprep.subr.bf16.mxu0 0
    %199 = vmatpush1.bf16.xpose.msra.mxu0 0
    %200 = vmatprep.subr.bf16.mxu0 0
    %201 = vmatpush1.bf16.xpose.msra.mxu0 0
    %202 = vmatprep.subr.bf16.mxu0 0
    %203 = vmatpush1.bf16.xpose.msra.mxu0 0
    %204 = vmatprep.subr.bf16.mxu0 0
    %205 = vmatpush1.bf16.xpose.msra.mxu0 0
    %206 = vmatprep.mubr.bf16.mxu0 0
    %207 = vmatmul.mubr.bf16.gmra.mrb[0].mxu0 %v169
    %v208 = vpop.f32.mrb[0].mxu0
    %v209 = vadd.f32 0.0, %v208
    %v210 = vpop.f32.mrb[0].mxu0
    %v211 = vpop.f32.mrb[0].mxu0
    %v212 = vpop.f32.mrb[0].mxu0
    %213 = vdwg.mxu0
    %215 = vrot.lane.b32.xlu0 %v113, 96
    %v216 = vpop.permute.xlu0 %215
    %v218 = vsel %vm118, %v113, 0
    %v221 = vsel %vm118, %v216, 0
    %223 = vmatprep.subr.bf16.mxu0 0
    %224 = vmatpush1.bf16.xpose.msra.mxu0 %v221
    %225 = vmatprep.subr.bf16.mxu0 0
    %226 = vmatpush1.bf16.xpose.msra.mxu0 0
    %227 = vmatprep.subr.bf16.mxu0 0
    %228 = vmatpush1.bf16.xpose.msra.mxu0 0
    %229 = vmatprep.subr.bf16.mxu0 0
    %230 = vmatpush1.bf16.xpose.msra.mxu0 0
    %231 = vmatprep.subr.bf16.mxu0 0
    %232 = vmatpush1.bf16.xpose.msra.mxu0 0
    %233 = vmatprep.subr.bf16.mxu0 0
    %234 = vmatpush1.bf16.xpose.msra.mxu0 0
    %235 = vmatprep.subr.bf16.mxu0 0
    %236 = vmatpush1.bf16.xpose.msra.mxu0 0
    %237 = vmatprep.subr.bf16.mxu0 0
    %238 = vmatpush1.bf16.xpose.msra.mxu0 0
    %239 = vmatprep.subr.bf16.mxu0 0
    %240 = vmatpush1.bf16.xpose.msra.mxu0 0
    %241 = vmatprep.subr.bf16.mxu0 0
    %242 = vmatpush1.bf16.xpose.msra.mxu0 0
    %243 = vmatprep.subr.bf16.mxu0 0
    %244 = vmatpush1.bf16.xpose.msra.mxu0 0
    %245 = vmatprep.subr.bf16.mxu0 0
    %246 = vmatpush1.bf16.xpose.msra.mxu0 0
    %247 = vmatprep.subr.bf16.mxu0 0
    %248 = vmatpush1.bf16.xpose.msra.mxu0 0
    %249 = vmatprep.subr.bf16.mxu0 0
    %250 = vmatpush1.bf16.xpose.msra.mxu0 0
    %251 = vmatprep.subr.bf16.mxu0 0
    %252 = vmatpush1.bf16.xpose.msra.mxu0 0
    %253 = vmatprep.subr.bf16.mxu0 0
    %254 = vmatpush1.bf16.xpose.msra.mxu0 0
    %255 = vmatprep.mubr.bf16.mxu0 0
    %256 = vmatmul.mubr.bf16.gmra.mrb[0].mxu0 %v218
    %v257 = vpop.f32.mrb[0].mxu0
    %v258 = vadd.f32 0.0, %v257
    %v259 = vpop.f32.mrb[0].mxu0
    %v260 = vpop.f32.mrb[0].mxu0
    %v261 = vpop.f32.mrb[0].mxu0
    %262 = vdwg.mxu0
    %264 = vrot.lane.b32.xlu0 %v114, 96
    %v265 = vpop.permute.xlu0 %264
    %v267 = vsel %vm118, %v114, 0
    %v270 = vsel %vm118, %v265, 0
    %272 = vmatprep.subr.bf16.mxu0 0
    %273 = vmatpush1.bf16.xpose.msra.mxu0 %v270
    %274 = vmatprep.subr.bf16.mxu0 0
    %275 = vmatpush1.bf16.xpose.msra.mxu0 0
    %276 = vmatprep.subr.bf16.mxu0 0
    %277 = vmatpush1.bf16.xpose.msra.mxu0 0
    %278 = vmatprep.subr.bf16.mxu0 0
    %279 = vmatpush1.bf16.xpose.msra.mxu0 0
    %280 = vmatprep.subr.bf16.mxu0 0
    %281 = vmatpush1.bf16.xpose.msra.mxu0 0
    %282 = vmatprep.subr.bf16.mxu0 0
    %283 = vmatpush1.bf16.xpose.msra.mxu0 0
    %284 = vmatprep.subr.bf16.mxu0 0
    %285 = vmatpush1.bf16.xpose.msra.mxu0 0
    %286 = vmatprep.subr.bf16.mxu0 0
    %287 = vmatpush1.bf16.xpose.msra.mxu0 0
    %288 = vmatprep.subr.bf16.mxu0 0
    %289 = vmatpush1.bf16.xpose.msra.mxu0 0
    %290 = vmatprep.subr.bf16.mxu0 0
    %291 = vmatpush1.bf16.xpose.msra.mxu0 0
    %292 = vmatprep.subr.bf16.mxu0 0
    %293 = vmatpush1.bf16.xpose.msra.mxu0 0
    %294 = vmatprep.subr.bf16.mxu0 0
    %295 = vmatpush1.bf16.xpose.msra.mxu0 0
    %296 = vmatprep.subr.bf16.mxu0 0
    %297 = vmatpush1.bf16.xpose.msra.mxu0 0
    %298 = vmatprep.subr.bf16.mxu0 0
    %299 = vmatpush1.bf16.xpose.msra.mxu0 0
    %300 = vmatprep.subr.bf16.mxu0 0
    %301 = vmatpush1.bf16.xpose.msra.mxu0 0
    %302 = vmatprep.subr.bf16.mxu0 0
    %303 = vmatpush1.bf16.xpose.msra.mxu0 0
    %304 = vmatprep.mubr.bf16.mxu0 0
    %305 = vmatmul.mubr.bf16.gmra.mrb[0].mxu0 %v267
    %v306 = vpop.f32.mrb[0].mxu0
    %v307 = vadd.f32 0.0, %v306
    %v308 = vpop.f32.mrb[0].mxu0
    %v309 = vpop.f32.mrb[0].mxu0
    %v310 = vpop.f32.mrb[0].mxu0
    %311 = vdwg.mxu0
    %vm312 = vcmask 64512
    %v313 = vsel %vm312, %v160, -inf
    %314 = vmax.xlane.f32.xlu0 %v313
    %v315 = vpop.xlane.xlu0 %314
    %v316 = vsel %vm312, %v209, -inf
    %317 = vmax.xlane.f32.xlu0 %v316
    %v318 = vpop.xlane.xlu0 %317
    %v319 = vsel %vm312, %v258, -inf
    %320 = vmax.xlane.f32.xlu0 %v319
    %v321 = vpop.xlane.xlu0 %320
    %v322 = vsel %vm312, %v307, -inf
    %323 = vmax.xlane.f32.xlu0 %v322
    %v324 = vpop.xlane.xlu0 %323
    %v325 = vsub.f32 %v160, %v315
    %v326 = vsub.f32 %v209, %v318
    %v327 = vsub.f32 %v258, %v321
    %v328 = vsub.f32 %v307, %v324
    %v329 = vmul.f32 %v325, 1.442695
    %v330 = vpow.pop %v329
    %v331 = vmul.f32 %v326, 1.442695
    %v332 = vpow.pop %v331
    %v333 = vmul.f32 %v327, 1.442695
    %v334 = vpow.pop %v333
    %v335 = vmul.f32 %v328, 1.442695
    %v336 = vpow.pop %v335
    %v337 = vsel %vm312, %v330, 0.0
    %338 = vadd.xlane.f32.xlu0 %v337
    %v339 = vpop.xlane.xlu0 %338
    %v340 = vsel %vm312, %v332, 0.0
    %341 = vadd.xlane.f32.xlu0 %v340
    %v342 = vpop.xlane.xlu0 %341
    %v343 = vsel %vm312, %v334, 0.0
    %344 = vadd.xlane.f32.xlu0 %v343
    %v345 = vpop.xlane.xlu0 %344
    %v346 = vsel %vm312, %v336, 0.0
    %347 = vadd.xlane.f32.xlu0 %v346
    %v348 = vpop.xlane.xlu0 %347
    %v349 = vrcp.pop %v339
    %v350 = vrcp.pop %v342
    %v351 = vrcp.pop %v345
    %v352 = vrcp.pop %v348
    %v353 = vmul.f32 %v330, %v349
    %v354 = vmul.f32 %v332, %v350
    %v355 = vmul.f32 %v334, %v351
    %v356 = vmul.f32 %v336, %v352
    %v357 = vpack.c.bf16 %v353, %v353
    %v358 = vpack.c.bf16 %v354, %v354
    %v359 = vpack.c.bf16 %v355, %v355
    %v360 = vpack.c.bf16 %v356, %v356
    %361 = vrot.lane.b32.xlu0 %v111, 64
    %v362 = vpop.permute.xlu0 %361
    %v364 = vsel %vm312, %v357, 0
    %vm366 = vcmask 1043456
    %v368 = vsel %vm366, %v362, 0
    %370 = vmatprep.subr.bf16.mxu0 0
    %371 = vmatpush1.bf16.msra.mxu0 %v368
    %372 = vmatprep.subr.bf16.mxu0 0
    %373 = vmatpush1.bf16.msra.mxu0 0
    %374 = vmatprep.subr.bf16.mxu0 0
    %375 = vmatpush1.bf16.msra.mxu0 0
    %376 = vmatprep.subr.bf16.mxu0 0
    %377 = vmatpush1.bf16.msra.mxu0 0
    %378 = vmatprep.subr.bf16.mxu0 0
    %379 = vmatpush1.bf16.msra.mxu0 0
    %380 = vmatprep.subr.bf16.mxu0 0
    %381 = vmatpush1.bf16.msra.mxu0 0
    %382 = vmatprep.subr.bf16.mxu0 0
    %383 = vmatpush1.bf16.msra.mxu0 0
    %384 = vmatprep.subr.bf16.mxu0 0
    %385 = vmatpush1.bf16.msra.mxu0 0
    %386 = vmatprep.subr.bf16.mxu0 0
    %387 = vmatpush1.bf16.msra.mxu0 0
    %388 = vmatprep.subr.bf16.mxu0 0
    %389 = vmatpush1.bf16.msra.mxu0 0
    %390 = vmatprep.subr.bf16.mxu0 0
    %391 = vmatpush1.bf16.msra.mxu0 0
    %392 = vmatprep.subr.bf16.mxu0 0
    %393 = vmatpush1.bf16.msra.mxu0 0
    %394 = vmatprep.subr.bf16.mxu0 0
    %395 = vmatpush1.bf16.msra.mxu0 0
    %396 = vmatprep.subr.bf16.mxu0 0
    %397 = vmatpush1.bf16.msra.mxu0 0
    %398 = vmatprep.subr.bf16.mxu0 0
    %399 = vmatpush1.bf16.msra.mxu0 0
    %400 = vmatprep.subr.bf16.mxu0 0
    %401 = vmatpush1.bf16.msra.mxu0 0
    %402 = vmatprep.mubr.bf16.mxu0 0
    %403 = vmatmul.mubr.bf16.gmra.mrb[0].mxu0 %v364
    %v404 = vpop.f32.mrb[0].mxu0
    %v405 = vadd.f32 0.0, %v404
    %v406 = vpop.f32.mrb[0].mxu0
    %v407 = vpop.f32.mrb[0].mxu0
    %v408 = vpop.f32.mrb[0].mxu0
    %409 = vdwg.mxu0
    %410 = vrot.lane.b32.xlu0 %v112, 64
    %v411 = vpop.permute.xlu0 %410
    %v413 = vsel %vm312, %v358, 0
    %v416 = vsel %vm366, %v411, 0
    %418 = vmatprep.subr.bf16.mxu0 0
    %419 = vmatpush1.bf16.msra.mxu0 %v416
    %420 = vmatprep.subr.bf16.mxu0 0
    %421 = vmatpush1.bf16.msra.mxu0 0
    %422 = vmatprep.subr.bf16.mxu0 0
    %423 = vmatpush1.bf16.msra.mxu0 0
    %424 = vmatprep.subr.bf16.mxu0 0
    %425 = vmatpush1.bf16.msra.mxu0 0
    %426 = vmatprep.subr.bf16.mxu0 0
    %427 = vmatpush1.bf16.msra.mxu0 0
    %428 = vmatprep.subr.bf16.mxu0 0
    %429 = vmatpush1.bf16.msra.mxu0 0
    %430 = vmatprep.subr.bf16.mxu0 0
    %431 = vmatpush1.bf16.msra.mxu0 0
    %432 = vmatprep.subr.bf16.mxu0 0
    %433 = vmatpush1.bf16.msra.mxu0 0
    %434 = vmatprep.subr.bf16.mxu0 0
    %435 = vmatpush1.bf16.msra.mxu0 0
    %436 = vmatprep.subr.bf16.mxu0 0
    %437 = vmatpush1.bf16.msra.mxu0 0
    %438 = vmatprep.subr.bf16.mxu0 0
    %439 = vmatpush1.bf16.msra.mxu0 0
    %440 = vmatprep.subr.bf16.mxu0 0
    %441 = vmatpush1.bf16.msra.mxu0 0
    %442 = vmatprep.subr.bf16.mxu0 0
    %443 = vmatpush1.bf16.msra.mxu0 0
    %444 = vmatprep.subr.bf16.mxu0 0
    %445 = vmatpush1.bf16.msra.mxu0 0
    %446 = vmatprep.subr.bf16.mxu0 0
    %447 = vmatpush1.bf16.msra.mxu0 0
    %448 = vmatprep.subr.bf16.mxu0 0
    %449 = vmatpush1.bf16.msra.mxu0 0
    %450 = vmatprep.mubr.bf16.mxu0 0
    %451 = vmatmul.mubr.bf16.gmra.mrb[0].mxu0 %v413
    %v452 = vpop.f32.mrb[0].mxu0
    %v453 = vadd.f32 0.0, %v452
    %v454 = vpop.f32.mrb[0].mxu0
    %v455 = vpop.f32.mrb[0].mxu0
    %v456 = vpop.f32.mrb[0].mxu0
    %457 = vdwg.mxu0
    %458 = vrot.lane.b32.xlu0 %v113, 64
    %v459 = vpop.permute.xlu0 %458
    %v461 = vsel %vm312, %v359, 0
    %v464 = vsel %vm366, %v459, 0
    %466 = vmatprep.subr.bf16.mxu0 0
    %467 = vmatpush1.bf16.msra.mxu0 %v464
    %468 = vmatprep.subr.bf16.mxu0 0
    %469 = vmatpush1.bf16.msra.mxu0 0
    %470 = vmatprep.subr.bf16.mxu0 0
    %471 = vmatpush1.bf16.msra.mxu0 0
    %472 = vmatprep.subr.bf16.mxu0 0
    %473 = vmatpush1.bf16.msra.mxu0 0
    %474 = vmatprep.subr.bf16.mxu0 0
    %475 = vmatpush1.bf16.msra.mxu0 0
    %476 = vmatprep.subr.bf16.mxu0 0
    %477 = vmatpush1.bf16.msra.mxu0 0
    %478 = vmatprep.subr.bf16.mxu0 0
    %479 = vmatpush1.bf16.msra.mxu0 0
    %480 = vmatprep.subr.bf16.mxu0 0
    %481 = vmatpush1.bf16.msra.mxu0 0
    %482 = vmatprep.subr.bf16.mxu0 0
    %483 = vmatpush1.bf16.msra.mxu0 0
    %484 = vmatprep.subr.bf16.mxu0 0
    %485 = vmatpush1.bf16.msra.mxu0 0
    %486 = vmatprep.subr.bf16.mxu0 0
    %487 = vmatpush1.bf16.msra.mxu0 0
    %488 = vmatprep.subr.bf16.mxu0 0
    %489 = vmatpush1.bf16.msra.mxu0 0
    %490 = vmatprep.subr.bf16.mxu0 0
    %491 = vmatpush1.bf16.msra.mxu0 0
    %492 = vmatprep.subr.bf16.mxu0 0
    %493 = vmatpush1.bf16.msra.mxu0 0
    %494 = vmatprep.subr.bf16.mxu0 0
    %495 = vmatpush1.bf16.msra.mxu0 0
    %496 = vmatprep.subr.bf16.mxu0 0
    %497 = vmatpush1.bf16.msra.mxu0 0
    %498 = vmatprep.mubr.bf16.mxu0 0
    %499 = vmatmul.mubr.bf16.gmra.mrb[0].mxu0 %v461
    %v500 = vpop.f32.mrb[0].mxu0
    %v501 = vadd.f32 0.0, %v500
    %v502 = vpop.f32.mrb[0].mxu0
    %v503 = vpop.f32.mrb[0].mxu0
    %v504 = vpop.f32.mrb[0].mxu0
    %505 = vdwg.mxu0
    %506 = vrot.lane.b32.xlu0 %v114, 64
    %v507 = vpop.permute.xlu0 %506
    %v509 = vsel %vm312, %v360, 0
    %v512 = vsel %vm366, %v507, 0
    %514 = vmatprep.subr.bf16.mxu0 0
    %515 = vmatpush1.bf16.msra.mxu0 %v512
    %516 = vmatprep.subr.bf16.mxu0 0
    %517 = vmatpush1.bf16.msra.mxu0 0
    %518 = vmatprep.subr.bf16.mxu0 0
    %519 = vmatpush1.bf16.msra.mxu0 0
    %520 = vmatprep.subr.bf16.mxu0 0
    %521 = vmatpush1.bf16.msra.mxu0 0
    %522 = vmatprep.subr.bf16.mxu0 0
    %523 = vmatpush1.bf16.msra.mxu0 0
    %524 = vmatprep.subr.bf16.mxu0 0
    %525 = vmatpush1.bf16.msra.mxu0 0
    %526 = vmatprep.subr.bf16.mxu0 0
    %527 = vmatpush1.bf16.msra.mxu0 0
    %528 = vmatprep.subr.bf16.mxu0 0
    %529 = vmatpush1.bf16.msra.mxu0 0
    %530 = vmatprep.subr.bf16.mxu0 0
    %531 = vmatpush1.bf16.msra.mxu0 0
    %532 = vmatprep.subr.bf16.mxu0 0
    %533 = vmatpush1.bf16.msra.mxu0 0
    %534 = vmatprep.subr.bf16.mxu0 0
    %535 = vmatpush1.bf16.msra.mxu0 0
    %536 = vmatprep.subr.bf16.mxu0 0
    %537 = vmatpush1.bf16.msra.mxu0 0
    %538 = vmatprep.subr.bf16.mxu0 0
    %539 = vmatpush1.bf16.msra.mxu0 0
    %540 = vmatprep.subr.bf16.mxu0 0
    %541 = vmatpush1.bf16.msra.mxu0 0
    %542 = vmatprep.subr.bf16.mxu0 0
    %543 = vmatpush1.bf16.msra.mxu0 0
    %544 = vmatprep.subr.bf16.mxu0 0
    %545 = vmatpush1.bf16.msra.mxu0 0
    %546 = vmatprep.mubr.bf16.mxu0 0
    %547 = vmatmul.mubr.bf16.gmra.mrb[0].mxu0 %v509
    %v548 = vpop.f32.mrb[0].mxu0
    %v549 = vadd.f32 0.0, %v548
    %v550 = vpop.f32.mrb[0].mxu0
    %v551 = vpop.f32.mrb[0].mxu0
    %v552 = vpop.f32.mrb[0].mxu0
    %553 = vdwg.mxu0
    %556 = vrot.lane.b32.xlu0 %v501, 16
    %v557 = vpop.permute.xlu0 %556
    %558 = vrot.lane.b32.xlu0 %v549, 16
    %v559 = vpop.permute.xlu0 %558
    %v562 = vsel %vm118, %v405, %v557
    %v563 = vsel %vm118, %v453, %v559
    %vm564 = vcmask 254976
    %565 = vst.msk [vmem:[#allocation2] sm:$0x3] %vm564, 0.0
    %566 = vst.msk [vmem:[#allocation2 + $0x18] sm:$0x3] %vm564, 0.0
    %567 = vst.msk [vmem:[#allocation2 + $0xa] sm:$0xff] %vm58, 0.0
    %vm568 = vcmask 259072
    %569 = vst.msk [vmem:[#allocation2 + $0x12] sm:$0x3f] %vm568, 0.0
    %570 = vst.msk [vmem:[#allocation2 + $0x22] sm:$0xff] %vm58, 0.0
    %571 = vst.msk [vmem:[#allocation2 + $0x2a] sm:$0x3f] %vm568, 0.0
    %572 = vst.msk [vmem:[#allocation2 + $0x2] sm:$0xff] %vm58, %v562
    %573 = vst.msk [vmem:[#allocation2 + $0x1a] sm:$0xff] %vm58, %v563
    %v574 = vld [vmem:[#allocation2] sm:$0xff]
    %v575 = vld [vmem:[#allocation2 + $0x8] sm:$0xff]
    %v576 = vld [vmem:[#allocation2 + $0x10] sm:$0xff]
    %v577 = vld [vmem:[#allocation2 + $0x18] sm:$0xff]
    %v578 = vld [vmem:[#allocation2 + $0x20] sm:$0xff]
    %v579 = vld [vmem:[#allocation2 + $0x28] sm:$0xff]
    %v580 = vld [vmem:[%s3] sm:$0xf]
    %v581 = vld [vmem:[%s3 + $0x4] sm:$0xf]
    %v582 = vld [vmem:[%s3 + $0x8] sm:$0xf]
    %v583 = vld [vmem:[%s3 + $0xc] sm:$0xf]
    %v584 = vld [vmem:[%s3 + $0x10] sm:$0xf]
    %v585 = vld [vmem:[%s3 + $0x14] sm:$0xf]
    %v586 = vld [vmem:[%s3 + $0x18] sm:$0xf]
    %v587 = vld [vmem:[%s3 + $0x1c] sm:$0xf]
    %v588 = vld [vmem:[%s3 + $0x20] sm:$0xf]
    %v589 = vld [vmem:[%s3 + $0x24] sm:$0xf]
    %v590 = vld [vmem:[%s3 + $0x28] sm:$0xf]
    %v591 = vld [vmem:[%s3 + $0x2c] sm:$0xf]
    %v592 = vld [vmem:[%s3 + $0x30] sm:$0xf]
    %v593 = vld [vmem:[%s3 + $0x34] sm:$0xf]
    %v594 = vld [vmem:[%s3 + $0x38] sm:$0xf]
    %v595 = vld [vmem:[%s3 + $0x3c] sm:$0xf]
    %v596 = vld [vmem:[%s3 + $0x40] sm:$0xf]
    %v597 = vld [vmem:[%s3 + $0x44] sm:$0xf]
    %v598 = vld [vmem:[%s3 + $0x48] sm:$0xf]
    %v599 = vld [vmem:[%s3 + $0x4c] sm:$0xf]
    %v600 = vpack.c.bf16 %v575, %v574
    %v601 = vpack.c.bf16 %v578, %v577
    %vm608 = vcmask 1046528
    %v609 = vrot.slane %v574, 1
    %v610 = vrot.slane %v575, 1
    %v611 = vsel %vm608, %v609, %v610
    %v612 = vrot.slane %v576, 1
    %v613 = vsel %vm608, %v610, %v612
    %v614 = vrot.slane %v577, 1
    %v615 = vrot.slane %v578, 1
    %v616 = vsel %vm608, %v614, %v615
    %v617 = vrot.slane %v579, 1
    %v618 = vsel %vm608, %v615, %v617
    %v623 = vpack.c.bf16 %v613, %v611
    %v624 = vpack.c.bf16 %v618, %v616
    %v629 = vunpack.c.l.b16 %v584
    %v630 = vunpack.c.l.b16 %v585
    %v631 = vunpack.c.l.b16 %v586
    %v632 = vunpack.c.l.b16 %v587
    %v633 = vpack.c.b16 %v630, %v629
    %v634 = vpack.c.b16 %v632, %v631
    %v638 = vsel %vm58, %v623, 0
    %v641 = vsel %vm58, %v624, 0
    %643 = vmatprep.subr.bf16.mxu0 0
    %644 = vmatpush1.bf16.msra.mxu0 %v633
    %645 = vmatprep.subr.bf16.mxu0 0
    %646 = vmatpush1.bf16.msra.mxu0 %v634
    %647 = vmatprep.subr.bf16.mxu0 0
    %648 = vmatpush1.bf16.msra.mxu0 0
    %649 = vmatprep.subr.bf16.mxu0 0
    %650 = vmatpush1.bf16.msra.mxu0 0
    %651 = vmatprep.subr.bf16.mxu0 0
    %652 = vmatpush1.bf16.msra.mxu0 0
    %653 = vmatprep.subr.bf16.mxu0 0
    %654 = vmatpush1.bf16.msra.mxu0 0
    %655 = vmatprep.subr.bf16.mxu0 0
    %656 = vmatpush1.bf16.msra.mxu0 0
    %657 = vmatprep.subr.bf16.mxu0 0
    %658 = vmatpush1.bf16.msra.mxu0 0
    %659 = vmatprep.subr.bf16.mxu0 0
    %660 = vmatpush1.bf16.msra.mxu0 0
    %661 = vmatprep.subr.bf16.mxu0 0
    %662 = vmatpush1.bf16.msra.mxu0 0
    %663 = vmatprep.subr.bf16.mxu0 0
    %664 = vmatpush1.bf16.msra.mxu0 0
    %665 = vmatprep.subr.bf16.mxu0 0
    %666 = vmatpush1.bf16.msra.mxu0 0
    %667 = vmatprep.subr.bf16.mxu0 0
    %668 = vmatpush1.bf16.msra.mxu0 0
    %669 = vmatprep.subr.bf16.mxu0 0
    %670 = vmatpush1.bf16.msra.mxu0 0
    %671 = vmatprep.subr.bf16.mxu0 0
    %672 = vmatpush1.bf16.msra.mxu0 0
    %673 = vmatprep.subr.bf16.mxu0 0
    %674 = vmatpush1.bf16.msra.mxu0 0
    %675 = vmatprep.mubr.bf16.mxu0 0
    %676 = vmatmul.mubr.bf16.gmra.mrb[0].mxu0 %v638
    %v677 = vpop.f32.mrb[0].mxu0
    %v678 = vadd.f32 0.0, %v677
    %v679 = vpop.f32.mrb[0].mxu0
    %v680 = vpop.f32.mrb[0].mxu0
    %v681 = vadd.f32 0.0, %v680
    %v682 = vpop.f32.mrb[0].mxu0
    %683 = vmatprep.mubr.bf16.mxu0 0
    %684 = vmatmul.mubr.bf16.gmra.mrb[0].mxu0 %v641
    %v685 = vpop.f32.mrb[0].mxu0
    %v686 = vadd.f32 0.0, %v685
    %v687 = vpop.f32.mrb[0].mxu0
    %v688 = vpop.f32.mrb[0].mxu0
    %v689 = vadd.f32 0.0, %v688
    %v690 = vpop.f32.mrb[0].mxu0
    %691 = vdwg.mxu0
    %v696 = vunpack.c.l.b16 %v580
    %v697 = vunpack.c.l.b16 %v581
    %v698 = vunpack.c.l.b16 %v582
    %v699 = vunpack.c.l.b16 %v583
    %v700 = vpack.c.b16 %v697, %v696
    %v701 = vpack.c.b16 %v699, %v698
    %v705 = vsel %vm58, %v600, 0
    %v708 = vsel %vm58, %v601, 0
    %710 = vmatprep.subr.bf16.mxu0 0
    %711 = vmatpush1.bf16.msra.mxu0 %v700
    %712 = vmatprep.subr.bf16.mxu0 0
    %713 = vmatpush1.bf16.msra.mxu0 %v701
    %714 = vmatprep.subr.bf16.mxu0 0
    %715 = vmatpush1.bf16.msra.mxu0 0
    %716 = vmatprep.subr.bf16.mxu0 0
    %717 = vmatpush1.bf16.msra.mxu0 0
    %718 = vmatprep.subr.bf16.mxu0 0
    %719 = vmatpush1.bf16.msra.mxu0 0
    %720 = vmatprep.subr.bf16.mxu0 0
    %721 = vmatpush1.bf16.msra.mxu0 0
    %722 = vmatprep.subr.bf16.mxu0 0
    %723 = vmatpush1.bf16.msra.mxu0 0
    %724 = vmatprep.subr.bf16.mxu0 0
    %725 = vmatpush1.bf16.msra.mxu0 0
    %726 = vmatprep.subr.bf16.mxu0 0
    %727 = vmatpush1.bf16.msra.mxu0 0
    %728 = vmatprep.subr.bf16.mxu0 0
    %729 = vmatpush1.bf16.msra.mxu0 0
    %730 = vmatprep.subr.bf16.mxu0 0
    %731 = vmatpush1.bf16.msra.mxu0 0
    %732 = vmatprep.subr.bf16.mxu0 0
    %733 = vmatpush1.bf16.msra.mxu0 0
    %734 = vmatprep.subr.bf16.mxu0 0
    %735 = vmatpush1.bf16.msra.mxu0 0
    %736 = vmatprep.subr.bf16.mxu0 0
    %737 = vmatpush1.bf16.msra.mxu0 0
    %738 = vmatprep.subr.bf16.mxu0 0
    %739 = vmatpush1.bf16.msra.mxu0 0
    %740 = vmatprep.subr.bf16.mxu0 0
    %741 = vmatpush1.bf16.msra.mxu0 0
    %742 = vmatprep.mubr.bf16.mxu0 0
    %743 = vmatmul.mubr.bf16.gmra.mrb[0].mxu0 %v705
    %v744 = vpop.f32.mrb[0].mxu0
    %v745 = vadd.f32 %v678, %v744
    %v746 = vpop.f32.mrb[0].mxu0
    %v747 = vpop.f32.mrb[0].mxu0
    %v748 = vadd.f32 %v681, %v747
    %v749 = vpop.f32.mrb[0].mxu0
    %750 = vmatprep.mubr.bf16.mxu0 0
    %751 = vmatmul.mubr.bf16.gmra.mrb[0].mxu0 %v708
    %v752 = vpop.f32.mrb[0].mxu0
    %v753 = vadd.f32 %v686, %v752
    %v754 = vpop.f32.mrb[0].mxu0
    %v755 = vpop.f32.mrb[0].mxu0
    %v756 = vadd.f32 %v689, %v755
    %v757 = vpop.f32.mrb[0].mxu0
    %758 = vdwg.mxu0
    %vm759 = vcmask 1045504
    %v760 = vrot.slane %v574, 2
    %v761 = vrot.slane %v575, 2
    %v762 = vsel %vm759, %v760, %v761
    %v763 = vrot.slane %v576, 2
    %v764 = vsel %vm759, %v761, %v763
    %v765 = vrot.slane %v577, 2
    %v766 = vrot.slane %v578, 2
    %v767 = vsel %vm759, %v765, %v766
    %v768 = vrot.slane %v579, 2
    %v769 = vsel %vm759, %v766, %v768
    %v774 = vpack.c.bf16 %v764, %v762
    %v775 = vpack.c.bf16 %v769, %v767
    %v780 = vunpack.c.l.b16 %v588
    %v781 = vunpack.c.l.b16 %v589
    %v782 = vunpack.c.l.b16 %v590
    %v783 = vunpack.c.l.b16 %v591
    %v784 = vpack.c.b16 %v781, %v780
    %v785 = vpack.c.b16 %v783, %v782
    %v789 = vsel %vm58, %v774, 0
    %v792 = vsel %vm58, %v775, 0
    %794 = vmatprep.subr.bf16.mxu0 0
    %795 = vmatpush1.bf16.msra.mxu0 %v784
    %796 = vmatprep.subr.bf16.mxu0 0
    %797 = vmatpush1.bf16.msra.mxu0 %v785
    %798 = vmatprep.subr.bf16.mxu0 0
    %799 = vmatpush1.bf16.msra.mxu0 0
    %800 = vmatprep.subr.bf16.mxu0 0
    %801 = vmatpush1.bf16.msra.mxu0 0
    %802 = vmatprep.subr.bf16.mxu0 0
    %803 = vmatpush1.bf16.msra.mxu0 0
    %804 = vmatprep.subr.bf16.mxu0 0
    %805 = vmatpush1.bf16.msra.mxu0 0
    %806 = vmatprep.subr.bf16.mxu0 0
    %807 = vmatpush1.bf16.msra.mxu0 0
    %808 = vmatprep.subr.bf16.mxu0 0
    %809 = vmatpush1.bf16.msra.mxu0 0
    %810 = vmatprep.subr.bf16.mxu0 0
    %811 = vmatpush1.bf16.msra.mxu0 0
    %812 = vmatprep.subr.bf16.mxu0 0
    %813 = vmatpush1.bf16.msra.mxu0 0
    %814 = vmatprep.subr.bf16.mxu0 0
    %815 = vmatpush1.bf16.msra.mxu0 0
    %816 = vmatprep.subr.bf16.mxu0 0
    %817 = vmatpush1.bf16.msra.mxu0 0
    %818 = vmatprep.subr.bf16.mxu0 0
    %819 = vmatpush1.bf16.msra.mxu0 0
    %820 = vmatprep.subr.bf16.mxu0 0
    %821 = vmatpush1.bf16.msra.mxu0 0
    %822 = vmatprep.subr.bf16.mxu0 0
    %823 = vmatpush1.bf16.msra.mxu0 0
    %824 = vmatprep.subr.bf16.mxu0 0
    %825 = vmatpush1.bf16.msra.mxu0 0
    %826 = vmatprep.mubr.bf16.mxu0 0
    %827 = vmatmul.mubr.bf16.gmra.mrb[0].mxu0 %v789
    %v828 = vpop.f32.mrb[0].mxu0
    %v829 = vadd.f32 0.0, %v828
    %v830 = vpop.f32.mrb[0].mxu0
    %v831 = vpop.f32.mrb[0].mxu0
    %v832 = vadd.f32 0.0, %v831
    %v833 = vpop.f32.mrb[0].mxu0
    %834 = vmatprep.mubr.bf16.mxu0 0
    %835 = vmatmul.mubr.bf16.gmra.mrb[0].mxu0 %v792
    %v836 = vpop.f32.mrb[0].mxu0
    %v837 = vadd.f32 0.0, %v836
    %v838 = vpop.f32.mrb[0].mxu0
    %v839 = vpop.f32.mrb[0].mxu0
    %v840 = vadd.f32 0.0, %v839
    %v841 = vpop.f32.mrb[0].mxu0
    %842 = vdwg.mxu0
    %v843 = vadd.f32 %v745, %v829
    %v844 = vadd.f32 %v748, %v832
    %v845 = vadd.f32 %v753, %v837
    %v846 = vadd.f32 %v756, %v840
    %vm847 = vcmask 1044480
    %v848 = vrot.slane %v574, 3
    %v849 = vrot.slane %v575, 3
    %v850 = vsel %vm847, %v848, %v849
    %v851 = vrot.slane %v576, 3
    %v852 = vsel %vm847, %v849, %v851
    %v853 = vrot.slane %v577, 3
    %v854 = vrot.slane %v578, 3
    %v855 = vsel %vm847, %v853, %v854
    %v856 = vrot.slane %v579, 3
    %v857 = vsel %vm847, %v854, %v856
    %v862 = vpack.c.bf16 %v852, %v850
    %v863 = vpack.c.bf16 %v857, %v855
    %v868 = vunpack.c.l.b16 %v592
    %v869 = vunpack.c.l.b16 %v593
    %v870 = vunpack.c.l.b16 %v594
    %v871 = vunpack.c.l.b16 %v595
    %v872 = vpack.c.b16 %v869, %v868
    %v873 = vpack.c.b16 %v871, %v870
    %v877 = vsel %vm58, %v862, 0
    %v880 = vsel %vm58, %v863, 0
    %882 = vmatprep.subr.bf16.mxu0 0
    %883 = vmatpush1.bf16.msra.mxu0 %v872
    %884 = vmatprep.subr.bf16.mxu0 0
    %885 = vmatpush1.bf16.msra.mxu0 %v873
    %886 = vmatprep.subr.bf16.mxu0 0
    %887 = vmatpush1.bf16.msra.mxu0 0
    %888 = vmatprep.subr.bf16.mxu0 0
    %889 = vmatpush1.bf16.msra.mxu0 0
    %890 = vmatprep.subr.bf16.mxu0 0
    %891 = vmatpush1.bf16.msra.mxu0 0
    %892 = vmatprep.subr.bf16.mxu0 0
    %893 = vmatpush1.bf16.msra.mxu0 0
    %894 = vmatprep.subr.bf16.mxu0 0
    %895 = vmatpush1.bf16.msra.mxu0 0
    %896 = vmatprep.subr.bf16.mxu0 0
    %897 = vmatpush1.bf16.msra.mxu0 0
    %898 = vmatprep.subr.bf16.mxu0 0
    %899 = vmatpush1.bf16.msra.mxu0 0
    %900 = vmatprep.subr.bf16.mxu0 0
    %901 = vmatpush1.bf16.msra.mxu0 0
    %902 = vmatprep.subr.bf16.mxu0 0
    %903 = vmatpush1.bf16.msra.mxu0 0
    %904 = vmatprep.subr.bf16.mxu0 0
    %905 = vmatpush1.bf16.msra.mxu0 0
    %906 = vmatprep.subr.bf16.mxu0 0
    %907 = vmatpush1.bf16.msra.mxu0 0
    %908 = vmatprep.subr.bf16.mxu0 0
    %909 = vmatpush1.bf16.msra.mxu0 0
    %910 = vmatprep.subr.bf16.mxu0 0
    %911 = vmatpush1.bf16.msra.mxu0 0
    %912 = vmatprep.subr.bf16.mxu0 0
    %913 = vmatpush1.bf16.msra.mxu0 0
    %914 = vmatprep.mubr.bf16.mxu0 0
    %915 = vmatmul.mubr.bf16.gmra.mrb[0].mxu0 %v877
    %v916 = vpop.f32.mrb[0].mxu0
    %v917 = vadd.f32 0.0, %v916
    %v918 = vpop.f32.mrb[0].mxu0
    %v919 = vpop.f32.mrb[0].mxu0
    %v920 = vadd.f32 0.0, %v919
    %v921 = vpop.f32.mrb[0].mxu0
    %922 = vmatprep.mubr.bf16.mxu0 0
    %923 = vmatmul.mubr.bf16.gmra.mrb[0].mxu0 %v880
    %v924 = vpop.f32.mrb[0].mxu0
    %v925 = vadd.f32 0.0, %v924
    %v926 = vpop.f32.mrb[0].mxu0
    %v927 = vpop.f32.mrb[0].mxu0
    %v928 = vadd.f32 0.0, %v927
    %v929 = vpop.f32.mrb[0].mxu0
    %930 = vdwg.mxu0
    %v931 = vadd.f32 %v843, %v917
    %v932 = vadd.f32 %v844, %v920
    %v933 = vadd.f32 %v845, %v925
    %v934 = vadd.f32 %v846, %v928
    %v935 = vrot.slane %v574, 4
    %v936 = vrot.slane %v575, 4
    %v937 = vsel %vm366, %v935, %v936
    %v938 = vrot.slane %v576, 4
    %v939 = vsel %vm366, %v936, %v938
    %v940 = vrot.slane %v577, 4
    %v941 = vrot.slane %v578, 4
    %v942 = vsel %vm366, %v940, %v941
    %v943 = vrot.slane %v579, 4
    %v944 = vsel %vm366, %v941, %v943
    %v949 = vpack.c.bf16 %v939, %v937
    %v950 = vpack.c.bf16 %v944, %v942
    %v955 = vunpack.c.l.b16 %v596
    %v956 = vunpack.c.l.b16 %v597
    %v957 = vunpack.c.l.b16 %v598
    %v958 = vunpack.c.l.b16 %v599
    %v959 = vpack.c.b16 %v956, %v955
    %v960 = vpack.c.b16 %v958, %v957
    %v964 = vsel %vm58, %v949, 0
    %v967 = vsel %vm58, %v950, 0
    %969 = vmatprep.subr.bf16.mxu0 0
    %970 = vmatpush1.bf16.msra.mxu0 %v959
    %971 = vmatprep.subr.bf16.mxu0 0
    %972 = vmatpush1.bf16.msra.mxu0 %v960
    %973 = vmatprep.subr.bf16.mxu0 0
    %974 = vmatpush1.bf16.msra.mxu0 0
    %975 = vmatprep.subr.bf16.mxu0 0
    %976 = vmatpush1.bf16.msra.mxu0 0
    %977 = vmatprep.subr.bf16.mxu0 0
    %978 = vmatpush1.bf16.msra.mxu0 0
    %979 = vmatprep.subr.bf16.mxu0 0
    %980 = vmatpush1.bf16.msra.mxu0 0
    %981 = vmatprep.subr.bf16.mxu0 0
    %982 = vmatpush1.bf16.msra.mxu0 0
    %983 = vmatprep.subr.bf16.mxu0 0
    %984 = vmatpush1.bf16.msra.mxu0 0
    %985 = vmatprep.subr.bf16.mxu0 0
    %986 = vmatpush1.bf16.msra.mxu0 0
    %987 = vmatprep.subr.bf16.mxu0 0
    %988 = vmatpush1.bf16.msra.mxu0 0
    %989 = vmatprep.subr.bf16.mxu0 0
    %990 = vmatpush1.bf16.msra.mxu0 0
    %991 = vmatprep.subr.bf16.mxu0 0
    %992 = vmatpush1.bf16.msra.mxu0 0
    %993 = vmatprep.subr.bf16.mxu0 0
    %994 = vmatpush1.bf16.msra.mxu0 0
    %995 = vmatprep.subr.bf16.mxu0 0
    %996 = vmatpush1.bf16.msra.mxu0 0
    %997 = vmatprep.subr.bf16.mxu0 0
    %998 = vmatpush1.bf16.msra.mxu0 0
    %999 = vmatprep.subr.bf16.mxu0 0
    %1000 = vmatpush1.bf16.msra.mxu0 0
    %1001 = vmatprep.mubr.bf16.mxu0 0
    %1002 = vmatmul.mubr.bf16.gmra.mrb[0].mxu0 %v964
    %v1003 = vpop.f32.mrb[0].mxu0
    %v1004 = vadd.f32 0.0, %v1003
    %v1005 = vpop.f32.mrb[0].mxu0
    %v1006 = vpop.f32.mrb[0].mxu0
    %v1007 = vadd.f32 0.0, %v1006
    %v1008 = vpop.f32.mrb[0].mxu0
    %1009 = vmatprep.mubr.bf16.mxu0 0
    %1010 = vmatmul.mubr.bf16.gmra.mrb[0].mxu0 %v967
    %v1011 = vpop.f32.mrb[0].mxu0
    %v1012 = vadd.f32 0.0, %v1011
    %v1013 = vpop.f32.mrb[0].mxu0
    %v1014 = vpop.f32.mrb[0].mxu0
    %v1015 = vadd.f32 0.0, %v1014
    %v1016 = vpop.f32.mrb[0].mxu0
    %1017 = vdwg.mxu0
    %v1018 = vadd.f32 %v931, %v1004
    %v1019 = vadd.f32 %v932, %v1007
    %v1020 = vadd.f32 %v933, %v1012
    %v1021 = vadd.f32 %v934, %v1015
    %v1022 = vld [vmem:[%s4] sm:$0x1]
    %v1024 = vlaneseq
    %v1025 = vshrl.u32 %v1024, 7
    %v1026 = vsub.s32 0, %v1025
    %v1027 = vrot.slane %v1022, %v1026
    %v1029 = vadd.f32 %v1018, %v1027
    %v1030 = vadd.f32 %v1019, %v1027
    %v1031 = vadd.f32 %v1020, %v1027
    %v1032 = vadd.f32 %v1021, %v1027
    %v1033 = vmax.f32 %v1029, 0.0
    %v1034 = vmax.f32 %v1030, 0.0
    %v1035 = vmax.f32 %v1031, 0.0
    %v1036 = vmax.f32 %v1032, 0.0
    %v1037 = vsel %vm312, %v1033, -inf
    %vm1038 = vcmask 58368
    %v1039 = vsel %vm1038, %v1034, -inf
    %v1040 = vmax.f32 %v1037, %v1039
    %v1041 = vrot.slane %v1040, 4
    %v1042 = vmax.f32 %v1040, %v1041
    %v1043 = vrot.slane %v1042, 2
    %v1044 = vmax.f32 %v1042, %v1043
    %v1045 = vrot.slane %v1044, 1
    %v1046 = vmax.f32 %v1044, %v1045
    %v1047 = vsel %vm312, %v1035, -inf
    %v1048 = vsel %vm1038, %v1036, -inf
    %v1049 = vmax.f32 %v1047, %v1048
    %v1050 = vrot.slane %v1049, 4
    %v1051 = vmax.f32 %v1049, %v1050
    %v1052 = vrot.slane %v1051, 2
    %v1053 = vmax.f32 %v1051, %v1052
    %v1054 = vrot.slane %v1053, 1
    %v1055 = vmax.f32 %v1053, %v1054
    %vm1056 = vcmask 130112
    %v1057 = vsel %vm1056, %v1033, -inf
    %vm1058 = vcmask 122944
    %v1059 = vsel %vm1058, %v1034, -inf
    %v1060 = vmax.f32 %v1057, %v1059
    %v1061 = vrot.slane %v1060, 4
    %v1062 = vmax.f32 %v1060, %v1061
    %v1063 = vrot.slane %v1062, 2
    %v1064 = vmax.f32 %v1062, %v1063
    %v1065 = vrot.slane %v1064, 1
    %v1066 = vmax.f32 %v1064, %v1065
    %v1067 = vsel %vm1056, %v1035, -inf
    %v1068 = vsel %vm1058, %v1036, -inf
    %v1069 = vmax.f32 %v1067, %v1068
    %v1070 = vrot.slane %v1069, 4
    %v1071 = vmax.f32 %v1069, %v1070
    %v1072 = vrot.slane %v1071, 2
    %v1073 = vmax.f32 %v1071, %v1072
    %v1074 = vrot.slane %v1073, 1
    %v1075 = vmax.f32 %v1073, %v1074
    %vm1076 = vcmask 195712
    %v1077 = vsel %vm1076, %v1033, -inf
    %v1078 = vrot.slane %v1077, 4
    %v1079 = vmax.f32 %v1077, %v1078
    %v1080 = vrot.slane %v1079, 2
    %v1081 = vmax.f32 %v1079, %v1080
    %v1082 = vrot.slane %v1081, 1
    %v1083 = vmax.f32 %v1081, %v1082
    %v1084 = vsel %vm1076, %v1035, -inf
    %v1085 = vrot.slane %v1084, 4
    %v1086 = vmax.f32 %v1084, %v1085
    %v1087 = vrot.slane %v1086, 2
    %v1088 = vmax.f32 %v1086, %v1087
    %v1089 = vrot.slane %v1088, 1
    %v1090 = vmax.f32 %v1088, %v1089
    %vm1093 = vcmask 1041409
    %v1094 = vsel %vm1093, %v1055, %v1046
    %v1098 = vsel %vm1093, %v1075, %v1066
    %v1102 = vsel %vm1093, %v1090, %v1083
    %v1104 = vsel %vm312, %v1094, %v1098
    %v1105 = vsel %vm118, %v1104, %v1102
    %v1106 = vpack.c.bf16 %v1105, %v1105
    %v1107 = vld [vmem:[%s5] sm:$0xf]
    %v1108 = vld [vmem:[%s5 + $0x4] sm:$0xf]
    %v1109 = vld [vmem:[%s5 + $0x8] sm:$0xf]
    %v1110 = vld [vmem:[%s6] sm:$0x1]
    %v1112 = vlaneseq
    %v1113 = vshrl.u32 %v1112, 7
    %v1114 = vsub.s32 0, %v1113
    %v1115 = vrot.slane %v1110, %v1114
    %v1120 = vunpack.c.l.b16 %v1107
    %v1121 = vunpack.c.l.b16 %v1108
    %v1122 = vunpack.c.l.b16 %v1109
    %v1123 = vpack.c.b16 %v1121, %v1120
    %v1124 = vpack.c.b16 %v1122, %v1122
    %vm1126 = vcmask 195584
    %v1128 = vsel %vm1126, %v1106, 0
    %v1131 = vsel %vm366, %v1124, 0
    %1133 = vmatprep.subr.bf16.mxu0 0
    %1134 = vmatpush1.bf16.msra.mxu0 %v1123
    %1135 = vmatprep.subr.bf16.mxu0 0
    %1136 = vmatpush1.bf16.msra.mxu0 %v1131
    %1137 = vmatprep.subr.bf16.mxu0 0
    %1138 = vmatpush1.bf16.msra.mxu0 0
    %1139 = vmatprep.subr.bf16.mxu0 0
    %1140 = vmatpush1.bf16.msra.mxu0 0
    %1141 = vmatprep.subr.bf16.mxu0 0
    %1142 = vmatpush1.bf16.msra.mxu0 0
    %1143 = vmatprep.subr.bf16.mxu0 0
    %1144 = vmatpush1.bf16.msra.mxu0 0
    %1145 = vmatprep.subr.bf16.mxu0 0
    %1146 = vmatpush1.bf16.msra.mxu0 0
    %1147 = vmatprep.subr.bf16.mxu0 0
    %1148 = vmatpush1.bf16.msra.mxu0 0
    %1149 = vmatprep.subr.bf16.mxu0 0
    %1150 = vmatpush1.bf16.msra.mxu0 0
    %1151 = vmatprep.subr.bf16.mxu0 0
    %1152 = vmatpush1.bf16.msra.mxu0 0
    %1153 = vmatprep.subr.bf16.mxu0 0
    %1154 = vmatpush1.bf16.msra.mxu0 0
    %1155 = vmatprep.subr.bf16.mxu0 0
    %1156 = vmatpush1.bf16.msra.mxu0 0
    %1157 = vmatprep.subr.bf16.mxu0 0
    %1158 = vmatpush1.bf16.msra.mxu0 0
    %1159 = vmatprep.subr.bf16.mxu0 0
    %1160 = vmatpush1.bf16.msra.mxu0 0
    %1161 = vmatprep.subr.bf16.mxu0 0
    %1162 = vmatpush1.bf16.msra.mxu0 0
    %1163 = vmatprep.subr.bf16.mxu0 0
    %1164 = vmatpush1.bf16.msra.mxu0 0
    %1165 = vmatprep.mubr.bf16.mxu0 0
    %1166 = vmatmul.mubr.bf16.gmra.mrb[0].mxu0 %v1128
    %v1167 = vpop.f32.mrb[0].mxu0
    %v1168 = vadd.f32 %v1115, %v1167
    %v1169 = vpop.f32.mrb[0].mxu0
    %v1170 = vpop.f32.mrb[0].mxu0
    %v1171 = vpop.f32.mrb[0].mxu0
    %1172 = vdwg.mxu0
    %1173 = vst [vmem:[#allocation3] sm:$0x3] %v1168
    // Predicated region
    $region30: #{tpu_custom_call.1} parent=1 // pred_check
      _
    $region31: #{tpu_custom_call.1} parent=1 // pred_check_branch
      %1175 = sbr.rel (0) target = $region33
    $region32: #{tpu_custom_call.1} parent=1 // pred_region
      %s1177 = ssub.s32 32, 32
      %1178 = vsyncadd [#allocation4], %s1177
      %s1180 = sshll.u32 [#allocation3], 4
      %s1181 = int_to_ptr.vmem [resolvable:$true] %s1180
      %1183 = dma.vmem_to_hbm [thread:$0]  %s1181, 32, %s7, [#allocation4]
    $region33: #{tpu_custom_call.1} parent=1 // pred_fallthru
      _
    // Predicated region
    $region34: #{tpu_custom_call.1} parent=1 // pred_check
      _
    $region35: #{tpu_custom_call.1} parent=1 // pred_check_branch
      %1185 = sbr.rel (0) target = $region37
    $region36: #{tpu_custom_call.1} parent=1 // pred_region
      %1186 = dma.done [#allocation4], 32
    $region37: #{tpu_custom_call.1} parent=1 // pred_fallthru
      _
    %1187 = vsyncpa [#allocation4], 1

</llo_original>
